<compile_context>
chip_gen: v7x
topology: tpu7x:2x2x1
jax: 0.10.0
libtpu: 0.0.40
codegen_flags: <defaults>
</compile_context>

<pallas_src>
import math

import jax
import jax.numpy as jnp
from jax.experimental import pallas as pl
from jax.experimental.pallas import tpu as pltpu

# ---- small synthetic config (consistent with the module) ----
B, S, HID = 2, 8, 32
NUM_HEADS = 4
HEAD_DIM = HID // NUM_HEADS
INTER = 64
EPS = 1e-6
ROPE_BASE = 10000.0
MIN_VAL = -1.0e6  # torch picks -1e6 because finfo(f32).min < -1e6


def decoder_layer_kernel(x_ref, mask_ref, cos_ref, sin_ref,
                         ln1_ref, ln2_ref,
                         wqkv_ref, wo_ref, wgu_ref, wd_ref,
                         out_ref):
    x = x_ref[...].astype(jnp.float32)          # (S, HID)
    mask = mask_ref[...]                        # (S, S)
    cos = cos_ref[...]                          # (S, HEAD_DIM)
    sin = sin_ref[...]                          # (S, HEAD_DIM)

    # ---- input RMSNorm (f32 VPU) ----
    var = jnp.mean(x * x, axis=-1, keepdims=True)
    h = (x * jax.lax.rsqrt(var + EPS)) * ln1_ref[...]

    # ---- fused QKV projection: one wide bf16 MXU push, f32 accumulation ----
    qkv = jnp.dot(h.astype(jnp.bfloat16), wqkv_ref[...],
                  preferred_element_type=jnp.float32)          # (S, 3*HID)
    q = qkv[:, :HID]
    k = qkv[:, HID:2 * HID]
    v = qkv[:, 2 * HID:]

    hdh = HEAD_DIM // 2

    def rope(t):  # t: (S, HEAD_DIM) f32
        # TODO(synk): at real HD=128 use pltpu.roll(t, hdh, axis=-1) * sign.
        rot = jnp.concatenate([-t[:, hdh:], t[:, :hdh]], axis=-1)
        return t * cos + rot * sin

    # ---- per-head attention core (scores/PV are inherently per-head) ----
    o_heads = []
    for hh in range(NUM_HEADS):  # TODO(synk): fori_loop/grid axis if heads grow
        lo = hh * HEAD_DIM
        q_h = rope(q[:, lo:lo + HEAD_DIM])                     # (S, HD) f32
        k_h = rope(k[:, lo:lo + HEAD_DIM])
        v_h = v[:, lo:lo + HEAD_DIM]

        # scores = q @ k^T (1/sqrt(HD) folded into wq in the wrapper)
        s = jax.lax.dot_general(q_h.astype(jnp.bfloat16), k_h.astype(jnp.bfloat16),
                                (((1,), (1,)), ((), ())),
                                preferred_element_type=jnp.float32)  # (S, S)
        s = jnp.maximum(s + mask, MIN_VAL)
        # softmax in f32 with exact divide (parity with reference)
        s = s - jnp.max(s, axis=-1, keepdims=True)
        p = jnp.exp(s)
        p = p / jnp.sum(p, axis=-1, keepdims=True)

        o_heads.append(jnp.dot(p.astype(jnp.bfloat16), v_h.astype(jnp.bfloat16),
                               preferred_element_type=jnp.float32))  # (S, HD)

    # lane-concat per-head outputs, then ONE K=HID matmul against Wo
    o = jnp.concatenate(o_heads, axis=-1)                       # (S, HID)
    attn = jnp.dot(o.astype(jnp.bfloat16), wo_ref[...],
                   preferred_element_type=jnp.float32)
    x = x + attn                                                # residual 1

    # ---- post-attention RMSNorm + SwiGLU MLP ----
    var2 = jnp.mean(x * x, axis=-1, keepdims=True)
    h2 = (x * jax.lax.rsqrt(var2 + EPS)) * ln2_ref[...]
    gu = jnp.dot(h2.astype(jnp.bfloat16), wgu_ref[...],
                 preferred_element_type=jnp.float32)            # (S, 2*INTER)
    g = gu[:, :INTER]
    u = gu[:, INTER:]
    m = (g * jax.nn.sigmoid(g)) * u                             # SiLU(gate)*up
    mlp = jnp.dot(m.astype(jnp.bfloat16), wd_ref[...],
                  preferred_element_type=jnp.float32)
    out_ref[...] = (x + mlp).astype(out_ref.dtype)              # residual 2


def longllama_decoder_layer(hidden_states, attention_mask, position_ids, params):
    """hidden_states: (B,S,HID); attention_mask: (B,1,S,S); position_ids: (B,S)."""
    B_, S_, H_ = hidden_states.shape
    HD = HEAD_DIM

    # --- rotary tables gathered at relative positions (host/XLA glue) ---
    inv_freq = 1.0 / (ROPE_BASE **
                      (jnp.arange(0, HD, 2, dtype=jnp.float32) / HD))
    rel_pos = position_ids - jnp.min(position_ids, axis=-1, keepdims=True)
    freqs = rel_pos[..., None].astype(jnp.float32) * inv_freq    # (B,S,HD/2)
    emb = jnp.concatenate([freqs, freqs], axis=-1)               # (B,S,HD)
    cos = jnp.cos(emb)
    sin = jnp.sin(emb)

    mask = attention_mask[:, 0].astype(jnp.float32)              # (B,S,S)

    # --- fused bf16 weights; fold 1/sqrt(HD) into the q columns ---
    scale = 1.0 / math.sqrt(HD)
    wqkv = jnp.concatenate([params["wq"] * scale, params["wk"], params["wv"]],
                           axis=1).astype(jnp.bfloat16)          # (HID, 3*HID)
    wo = params["wo"].astype(jnp.bfloat16)                       # (HID, HID)
    wgu = jnp.concatenate([params["wgate"], params["wup"]],
                          axis=1).astype(jnp.bfloat16)           # (HID, 2*INTER)
    wd = params["wdown"].astype(jnp.bfloat16)                    # (INTER, HID)

    out = pl.pallas_call(
        decoder_layer_kernel,
        out_shape=jax.ShapeDtypeStruct((B_, S_, H_), hidden_states.dtype),
        grid=(B_,),
        in_specs=[
            pl.BlockSpec((None, S_, H_), lambda b: (b, 0, 0)),   # x
            pl.BlockSpec((None, S_, S_), lambda b: (b, 0, 0)),   # mask
            pl.BlockSpec((None, S_, HD), lambda b: (b, 0, 0)),   # cos
            pl.BlockSpec((None, S_, HD), lambda b: (b, 0, 0)),   # sin
            pl.BlockSpec((1, H_), lambda b: (0, 0)),             # ln1 (constant)
            pl.BlockSpec((1, H_), lambda b: (0, 0)),             # ln2 (constant)
            pl.BlockSpec((H_, 3 * H_), lambda b: (0, 0)),        # wqkv (constant)
            pl.BlockSpec((H_, H_), lambda b: (0, 0)),            # wo   (constant)
            pl.BlockSpec((H_, 2 * INTER), lambda b: (0, 0)),     # wgate|wup
            pl.BlockSpec((INTER, H_), lambda b: (0, 0)),         # wdown
        ],
        out_specs=pl.BlockSpec((None, S_, H_), lambda b: (b, 0, 0)),
        compiler_params=pltpu.CompilerParams(
            dimension_semantics=("parallel",)),
    )(hidden_states, mask, cos, sin,
      params["ln1"], params["ln2"], wqkv, wo, wgu, wd)
    return out


# ---- pure-JAX f32 reference (mirrors the PyTorch forward) ----
def reference(hidden_states, attention_mask, position_ids, params):
    x = hidden_states.astype(jnp.float32)

    def rms(t, w):
        var = jnp.mean(t * t, axis=-1, keepdims=True)
        return (t * jax.lax.rsqrt(var + EPS)) * w[0]

    inv_freq = 1.0 / (ROPE_BASE **
                      (jnp.arange(0, HEAD_DIM, 2, dtype=jnp.float32) / HEAD_DIM))
    rel_pos = position_ids - jnp.min(position_ids, axis=-1, keepdims=True)
    freqs = rel_pos[..., None].astype(jnp.float32) * inv_freq
    emb = jnp.concatenate([freqs, freqs], axis=-1)
    cos, sin = jnp.cos(emb)[:, None], jnp.sin(emb)[:, None]      # (B,1,S,D)

    def rot_half(t):
        d = t.shape[-1] // 2
        return jnp.concatenate([-t[..., d:], t[..., :d]], axis=-1)

    h = rms(x, params["ln1"])

    def heads(y, w):
        return (y @ w).reshape(x.shape[0], x.shape[1], NUM_HEADS, HEAD_DIM).transpose(0, 2, 1, 3)

    q, k, v = heads(h, params["wq"]), heads(h, params["wk"]), heads(h, params["wv"])
    q = q * cos + rot_half(q) * sin
    k = k * cos + rot_half(k) * sin
    w = jnp.einsum("bhqd,bhkd->bhqk", q, k) / math.sqrt(HEAD_DIM)
    w = jnp.maximum(w + attention_mask, MIN_VAL)
    w = jax.nn.softmax(w, axis=-1)
    o = jnp.einsum("bhqk,bhkd->bhqd", w, v).transpose(0, 2, 1, 3).reshape(x.shape)
    x = x + o @ params["wo"]

    h2 = rms(x, params["ln2"])
    g = h2 @ params["wgate"]
    u = h2 @ params["wup"]
    return x + ((g * jax.nn.sigmoid(g)) * u) @ params["wdown"]


if __name__ == "__main__":
    key = jax.random.PRNGKey(0)
    ks = jax.random.split(key, 10)

    hidden_states = jax.random.normal(ks[0], (B, S, HID), dtype=jnp.float32)
    # causal attention mask, shape (B, 1, S, S) as in the module docstring
    causal = jnp.tril(jnp.ones((S, S), dtype=bool))
    attention_mask = jnp.where(causal, 0.0, -1e9).astype(jnp.float32)
    attention_mask = jnp.broadcast_to(attention_mask, (B, 1, S, S))
    position_ids = jnp.broadcast_to(jnp.arange(S, dtype=jnp.int32), (B, S))

    scale = 0.05
    params = {
        "ln1": jnp.ones((1, HID), jnp.float32),
        "ln2": jnp.ones((1, HID), jnp.float32),
        "wq": scale * jax.random.normal(ks[1], (HID, HID), jnp.float32),
        "wk": scale * jax.random.normal(ks[2], (HID, HID), jnp.float32),
        "wv": scale * jax.random.normal(ks[3], (HID, HID), jnp.float32),
        "wo": scale * jax.random.normal(ks[4], (HID, HID), jnp.float32),
        "wgate": scale * jax.random.normal(ks[5], (HID, INTER), jnp.float32),
        "wup": scale * jax.random.normal(ks[6], (HID, INTER), jnp.float32),
        "wdown": scale * jax.random.normal(ks[7], (INTER, HID), jnp.float32),
    }

    out = longllama_decoder_layer(hidden_states, attention_mask, position_ids, params)
    out = jax.block_until_ready(out)

    ref = reference(hidden_states, attention_mask, position_ids, params)
    assert out.shape == (B, S, HID)
    assert jnp.allclose(out, ref, atol=2e-2, rtol=2e-2), "mismatch vs reference"

    # TODO(synk): KV-cache append/drop and LongLlamaMemCache update paths are
    # host-side cache bookkeeping, not kernel compute; omitted here.
    print("KERNEL_OK")
</pallas_src>

<mosaic_0001>
module attributes {stable_mosaic.version = 11 : i64} {
  func.func @decoder_layer_kernel(%arg0: i32, %arg1: memref<1x8x32xf32, #tpu.memory_space<vmem>>, %arg2: memref<1x8x8xf32, #tpu.memory_space<vmem>>, %arg3: memref<1x8x8xf32, #tpu.memory_space<vmem>>, %arg4: memref<1x8x8xf32, #tpu.memory_space<vmem>>, %arg5: memref<1x32xf32, #tpu.memory_space<vmem>>, %arg6: memref<1x32xf32, #tpu.memory_space<vmem>>, %arg7: memref<32x96xbf16, #tpu.memory_space<vmem>>, %arg8: memref<32x32xbf16, #tpu.memory_space<vmem>>, %arg9: memref<32x128xbf16, #tpu.memory_space<vmem>>, %arg10: memref<64x32xbf16, #tpu.memory_space<vmem>>, %arg11: memref<1x8x32xf32, #tpu.memory_space<vmem>>) attributes {dimension_semantics = [#tpu.dimension_semantics<parallel>], iteration_bounds = array<i64: 2>, scalar_prefetch = 0 : i64, scratch_operands = 0 : i64, tpu.core_type = #tpu.core_type<tc>, window_params = [{transform_indices = @transform_0, window_bounds = array<i64: 1, 8, 32>}, {transform_indices = @transform_1, window_bounds = array<i64: 1, 8, 8>}, {transform_indices = @transform_2, window_bounds = array<i64: 1, 8, 8>}, {transform_indices = @transform_3, window_bounds = array<i64: 1, 8, 8>}, {pipeline_mode = #tpu.pipeline_mode<synchronous>, transform_indices = @transform_4, window_bounds = array<i64: 1, 32>}, {pipeline_mode = #tpu.pipeline_mode<synchronous>, transform_indices = @transform_5, window_bounds = array<i64: 1, 32>}, {pipeline_mode = #tpu.pipeline_mode<synchronous>, transform_indices = @transform_6, window_bounds = array<i64: 32, 96>}, {pipeline_mode = #tpu.pipeline_mode<synchronous>, transform_indices = @transform_7, window_bounds = array<i64: 32, 32>}, {pipeline_mode = #tpu.pipeline_mode<synchronous>, transform_indices = @transform_8, window_bounds = array<i64: 32, 128>}, {pipeline_mode = #tpu.pipeline_mode<synchronous>, transform_indices = @transform_9, window_bounds = array<i64: 64, 32>}, {transform_indices = @transform_10, window_bounds = array<i64: 1, 8, 32>}]} {
    %c0 = arith.constant 0 : index
    %c0_0 = arith.constant 0 : index
    %c0_1 = arith.constant 0 : index
    %0 = vector.load %arg1[%c0, %c0_0, %c0_1] : memref<1x8x32xf32, #tpu.memory_space<vmem>>, vector<1x8x32xf32>
    %1 = vector.shape_cast %0 : vector<1x8x32xf32> to vector<8x32xf32>
    %c0_2 = arith.constant 0 : index
    %c0_3 = arith.constant 0 : index
    %c0_4 = arith.constant 0 : index
    %2 = vector.load %arg2[%c0_2, %c0_3, %c0_4] : memref<1x8x8xf32, #tpu.memory_space<vmem>>, vector<1x8x8xf32>
    %3 = vector.shape_cast %2 : vector<1x8x8xf32> to vector<8x8xf32>
    %c0_5 = arith.constant 0 : index
    %c0_6 = arith.constant 0 : index
    %c0_7 = arith.constant 0 : index
    %4 = vector.load %arg3[%c0_5, %c0_6, %c0_7] : memref<1x8x8xf32, #tpu.memory_space<vmem>>, vector<1x8x8xf32>
    %5 = vector.shape_cast %4 : vector<1x8x8xf32> to vector<8x8xf32>
    %c0_8 = arith.constant 0 : index
    %c0_9 = arith.constant 0 : index
    %c0_10 = arith.constant 0 : index
    %6 = vector.load %arg4[%c0_8, %c0_9, %c0_10] : memref<1x8x8xf32, #tpu.memory_space<vmem>>, vector<1x8x8xf32>
    %7 = vector.shape_cast %6 : vector<1x8x8xf32> to vector<8x8xf32>
    %8 = arith.mulf %1, %1 : vector<8x32xf32>
    %cst = arith.constant dense<0.000000e+00> : vector<8xf32>
    %9 = vector.multi_reduction <add>, %8, %cst [1] : vector<8x32xf32> to vector<8xf32>
    %10 = vector.shape_cast %9 : vector<8xf32> to vector<8x1xf32>
    %cst_11 = arith.constant 3.200000e+01 : f32
    %11 = vector.broadcast %cst_11 : f32 to vector<8x1xf32>
    %12 = arith.divf %10, %11 : vector<8x1xf32>
    %cst_12 = arith.constant 9.99999997E-7 : f32
    %13 = vector.broadcast %cst_12 : f32 to vector<8x1xf32>
    %14 = arith.addf %12, %13 : vector<8x1xf32>
    %15 = math.rsqrt %14 : vector<8x1xf32>
    %16 = vector.broadcast %15 : vector<8x1xf32> to vector<8x32xf32>
    %17 = arith.mulf %1, %16 : vector<8x32xf32>
    %c0_13 = arith.constant 0 : index
    %c0_14 = arith.constant 0 : index
    %18 = vector.load %arg5[%c0_13, %c0_14] : memref<1x32xf32, #tpu.memory_space<vmem>>, vector<1x32xf32>
    %19 = vector.broadcast %18 : vector<1x32xf32> to vector<8x32xf32>
    %20 = arith.mulf %17, %19 : vector<8x32xf32>
    %21 = arith.truncf %20 : vector<8x32xf32> to vector<8x32xbf16>
    %c0_15 = arith.constant 0 : index
    %c0_16 = arith.constant 0 : index
    %22 = vector.load %arg7[%c0_15, %c0_16] : memref<32x96xbf16, #tpu.memory_space<vmem>>, vector<32x96xbf16>
    %cst_17 = arith.constant dense<0.000000e+00> : vector<8x96xf32>
    %23 = tpu.matmul %21, %22, %cst_17 {dimension_numbers = #tpu.dot_dimension_numbers<[1], [0], [0], [1], [0, 0, 1, 1], [], []>} : vector<8x32xbf16>, vector<32x96xbf16>, vector<8x96xf32> -> vector<8x96xf32>
    %24 = vector.extract_strided_slice %23 {offsets = [0, 0], sizes = [8, 32], strides = [1, 1]} : vector<8x96xf32> to vector<8x32xf32>
    %25 = vector.extract_strided_slice %23 {offsets = [0, 32], sizes = [8, 32], strides = [1, 1]} : vector<8x96xf32> to vector<8x32xf32>
    %26 = vector.extract_strided_slice %23 {offsets = [0, 64], sizes = [8, 32], strides = [1, 1]} : vector<8x96xf32> to vector<8x32xf32>
    %27 = vector.extract_strided_slice %24 {offsets = [0, 0], sizes = [8, 8], strides = [1, 1]} : vector<8x32xf32> to vector<8x8xf32>
    %28 = vector.extract_strided_slice %27 {offsets = [0, 4], sizes = [8, 4], strides = [1, 1]} : vector<8x8xf32> to vector<8x4xf32>
    %cst_18 = arith.constant 0.000000e+00 : f32
    %29 = vector.broadcast %cst_18 : f32 to vector<8x4xf32>
    %30 = arith.subf %29, %28 : vector<8x4xf32>
    %31 = vector.extract_strided_slice %27 {offsets = [0, 0], sizes = [8, 4], strides = [1, 1]} : vector<8x8xf32> to vector<8x4xf32>
    %32 = tpu.concatenate %30, %31 in 1 : vector<8x4xf32>, vector<8x4xf32> -> vector<8x8xf32>
    %33 = arith.mulf %27, %5 : vector<8x8xf32>
    %34 = arith.mulf %32, %7 : vector<8x8xf32>
    %35 = arith.addf %33, %34 : vector<8x8xf32>
    %36 = vector.extract_strided_slice %25 {offsets = [0, 0], sizes = [8, 8], strides = [1, 1]} : vector<8x32xf32> to vector<8x8xf32>
    %37 = vector.extract_strided_slice %36 {offsets = [0, 4], sizes = [8, 4], strides = [1, 1]} : vector<8x8xf32> to vector<8x4xf32>
    %cst_19 = arith.constant 0.000000e+00 : f32
    %38 = vector.broadcast %cst_19 : f32 to vector<8x4xf32>
    %39 = arith.subf %38, %37 : vector<8x4xf32>
    %40 = vector.extract_strided_slice %36 {offsets = [0, 0], sizes = [8, 4], strides = [1, 1]} : vector<8x8xf32> to vector<8x4xf32>
    %41 = tpu.concatenate %39, %40 in 1 : vector<8x4xf32>, vector<8x4xf32> -> vector<8x8xf32>
    %42 = arith.mulf %36, %5 : vector<8x8xf32>
    %43 = arith.mulf %41, %7 : vector<8x8xf32>
    %44 = arith.addf %42, %43 : vector<8x8xf32>
    %45 = vector.extract_strided_slice %26 {offsets = [0, 0], sizes = [8, 8], strides = [1, 1]} : vector<8x32xf32> to vector<8x8xf32>
    %46 = arith.truncf %35 : vector<8x8xf32> to vector<8x8xbf16>
    %47 = arith.truncf %44 : vector<8x8xf32> to vector<8x8xbf16>
    %cst_20 = arith.constant dense<0.000000e+00> : vector<8x8xf32>
    %48 = tpu.matmul %46, %47, %cst_20 {dimension_numbers = #tpu.dot_dimension_numbers<[1], [1], [0], [0], [0, 0, 1, 0], [], []>} : vector<8x8xbf16>, vector<8x8xbf16>, vector<8x8xf32> -> vector<8x8xf32>
    %49 = arith.addf %48, %3 : vector<8x8xf32>
    %cst_21 = arith.constant -1.000000e+06 : f32
    %50 = vector.broadcast %cst_21 : f32 to vector<8x8xf32>
    %51 = arith.maximumf %49, %50 : vector<8x8xf32>
    %cst_22 = arith.constant dense<0xFF800000> : vector<8xf32>
    %52 = vector.multi_reduction <maximumf>, %51, %cst_22 [1] : vector<8x8xf32> to vector<8xf32>
    %53 = vector.shape_cast %52 : vector<8xf32> to vector<8x1xf32>
    %54 = vector.broadcast %53 : vector<8x1xf32> to vector<8x8xf32>
    %55 = arith.subf %51, %54 : vector<8x8xf32>
    %56 = math.exp %55 : vector<8x8xf32>
    %cst_23 = arith.constant dense<0.000000e+00> : vector<8xf32>
    %57 = vector.multi_reduction <add>, %56, %cst_23 [1] : vector<8x8xf32> to vector<8xf32>
    %58 = vector.shape_cast %57 : vector<8xf32> to vector<8x1xf32>
    %59 = vector.broadcast %58 : vector<8x1xf32> to vector<8x8xf32>
    %60 = arith.divf %56, %59 : vector<8x8xf32>
    %61 = arith.truncf %60 : vector<8x8xf32> to vector<8x8xbf16>
    %62 = arith.truncf %45 : vector<8x8xf32> to vector<8x8xbf16>
    %cst_24 = arith.constant dense<0.000000e+00> : vector<8x8xf32>
    %63 = tpu.matmul %61, %62, %cst_24 {dimension_numbers = #tpu.dot_dimension_numbers<[1], [0], [0], [1], [0, 0, 1, 1], [], []>} : vector<8x8xbf16>, vector<8x8xbf16>, vector<8x8xf32> -> vector<8x8xf32>
    %64 = vector.extract_strided_slice %24 {offsets = [0, 8], sizes = [8, 8], strides = [1, 1]} : vector<8x32xf32> to vector<8x8xf32>
    %65 = vector.extract_strided_slice %64 {offsets = [0, 4], sizes = [8, 4], strides = [1, 1]} : vector<8x8xf32> to vector<8x4xf32>
    %cst_25 = arith.constant 0.000000e+00 : f32
    %66 = vector.broadcast %cst_25 : f32 to vector<8x4xf32>
    %67 = arith.subf %66, %65 : vector<8x4xf32>
    %68 = vector.extract_strided_slice %64 {offsets = [0, 0], sizes = [8, 4], strides = [1, 1]} : vector<8x8xf32> to vector<8x4xf32>
    %69 = tpu.concatenate %67, %68 in 1 : vector<8x4xf32>, vector<8x4xf32> -> vector<8x8xf32>
    %70 = arith.mulf %64, %5 : vector<8x8xf32>
    %71 = arith.mulf %69, %7 : vector<8x8xf32>
    %72 = arith.addf %70, %71 : vector<8x8xf32>
    %73 = vector.extract_strided_slice %25 {offsets = [0, 8], sizes = [8, 8], strides = [1, 1]} : vector<8x32xf32> to vector<8x8xf32>
    %74 = vector.extract_strided_slice %73 {offsets = [0, 4], sizes = [8, 4], strides = [1, 1]} : vector<8x8xf32> to vector<8x4xf32>
    %cst_26 = arith.constant 0.000000e+00 : f32
    %75 = vector.broadcast %cst_26 : f32 to vector<8x4xf32>
    %76 = arith.subf %75, %74 : vector<8x4xf32>
    %77 = vector.extract_strided_slice %73 {offsets = [0, 0], sizes = [8, 4], strides = [1, 1]} : vector<8x8xf32> to vector<8x4xf32>
    %78 = tpu.concatenate %76, %77 in 1 : vector<8x4xf32>, vector<8x4xf32> -> vector<8x8xf32>
    %79 = arith.mulf %73, %5 : vector<8x8xf32>
    %80 = arith.mulf %78, %7 : vector<8x8xf32>
    %81 = arith.addf %79, %80 : vector<8x8xf32>
    %82 = vector.extract_strided_slice %26 {offsets = [0, 8], sizes = [8, 8], strides = [1, 1]} : vector<8x32xf32> to vector<8x8xf32>
    %83 = arith.truncf %72 : vector<8x8xf32> to vector<8x8xbf16>
    %84 = arith.truncf %81 : vector<8x8xf32> to vector<8x8xbf16>
    %cst_27 = arith.constant dense<0.000000e+00> : vector<8x8xf32>
    %85 = tpu.matmul %83, %84, %cst_27 {dimension_numbers = #tpu.dot_dimension_numbers<[1], [1], [0], [0], [0, 0, 1, 0], [], []>} : vector<8x8xbf16>, vector<8x8xbf16>, vector<8x8xf32> -> vector<8x8xf32>
    %86 = arith.addf %85, %3 : vector<8x8xf32>
    %cst_28 = arith.constant -1.000000e+06 : f32
    %87 = vector.broadcast %cst_28 : f32 to vector<8x8xf32>
    %88 = arith.maximumf %86, %87 : vector<8x8xf32>
    %cst_29 = arith.constant dense<0xFF800000> : vector<8xf32>
    %89 = vector.multi_reduction <maximumf>, %88, %cst_29 [1] : vector<8x8xf32> to vector<8xf32>
    %90 = vector.shape_cast %89 : vector<8xf32> to vector<8x1xf32>
    %91 = vector.broadcast %90 : vector<8x1xf32> to vector<8x8xf32>
    %92 = arith.subf %88, %91 : vector<8x8xf32>
    %93 = math.exp %92 : vector<8x8xf32>
    %cst_30 = arith.constant dense<0.000000e+00> : vector<8xf32>
    %94 = vector.multi_reduction <add>, %93, %cst_30 [1] : vector<8x8xf32> to vector<8xf32>
    %95 = vector.shape_cast %94 : vector<8xf32> to vector<8x1xf32>
    %96 = vector.broadcast %95 : vector<8x1xf32> to vector<8x8xf32>
    %97 = arith.divf %93, %96 : vector<8x8xf32>
    %98 = arith.truncf %97 : vector<8x8xf32> to vector<8x8xbf16>
    %99 = arith.truncf %82 : vector<8x8xf32> to vector<8x8xbf16>
    %cst_31 = arith.constant dense<0.000000e+00> : vector<8x8xf32>
    %100 = tpu.matmul %98, %99, %cst_31 {dimension_numbers = #tpu.dot_dimension_numbers<[1], [0], [0], [1], [0, 0, 1, 1], [], []>} : vector<8x8xbf16>, vector<8x8xbf16>, vector<8x8xf32> -> vector<8x8xf32>
    %101 = vector.extract_strided_slice %24 {offsets = [0, 16], sizes = [8, 8], strides = [1, 1]} : vector<8x32xf32> to vector<8x8xf32>
    %102 = vector.extract_strided_slice %101 {offsets = [0, 4], sizes = [8, 4], strides = [1, 1]} : vector<8x8xf32> to vector<8x4xf32>
    %cst_32 = arith.constant 0.000000e+00 : f32
    %103 = vector.broadcast %cst_32 : f32 to vector<8x4xf32>
    %104 = arith.subf %103, %102 : vector<8x4xf32>
    %105 = vector.extract_strided_slice %101 {offsets = [0, 0], sizes = [8, 4], strides = [1, 1]} : vector<8x8xf32> to vector<8x4xf32>
    %106 = tpu.concatenate %104, %105 in 1 : vector<8x4xf32>, vector<8x4xf32> -> vector<8x8xf32>
    %107 = arith.mulf %101, %5 : vector<8x8xf32>
    %108 = arith.mulf %106, %7 : vector<8x8xf32>
    %109 = arith.addf %107, %108 : vector<8x8xf32>
    %110 = vector.extract_strided_slice %25 {offsets = [0, 16], sizes = [8, 8], strides = [1, 1]} : vector<8x32xf32> to vector<8x8xf32>
    %111 = vector.extract_strided_slice %110 {offsets = [0, 4], sizes = [8, 4], strides = [1, 1]} : vector<8x8xf32> to vector<8x4xf32>
    %cst_33 = arith.constant 0.000000e+00 : f32
    %112 = vector.broadcast %cst_33 : f32 to vector<8x4xf32>
    %113 = arith.subf %112, %111 : vector<8x4xf32>
    %114 = vector.extract_strided_slice %110 {offsets = [0, 0], sizes = [8, 4], strides = [1, 1]} : vector<8x8xf32> to vector<8x4xf32>
    %115 = tpu.concatenate %113, %114 in 1 : vector<8x4xf32>, vector<8x4xf32> -> vector<8x8xf32>
    %116 = arith.mulf %110, %5 : vector<8x8xf32>
    %117 = arith.mulf %115, %7 : vector<8x8xf32>
    %118 = arith.addf %116, %117 : vector<8x8xf32>
    %119 = vector.extract_strided_slice %26 {offsets = [0, 16], sizes = [8, 8], strides = [1, 1]} : vector<8x32xf32> to vector<8x8xf32>
    %120 = arith.truncf %109 : vector<8x8xf32> to vector<8x8xbf16>
    %121 = arith.truncf %118 : vector<8x8xf32> to vector<8x8xbf16>
    %cst_34 = arith.constant dense<0.000000e+00> : vector<8x8xf32>
    %122 = tpu.matmul %120, %121, %cst_34 {dimension_numbers = #tpu.dot_dimension_numbers<[1], [1], [0], [0], [0, 0, 1, 0], [], []>} : vector<8x8xbf16>, vector<8x8xbf16>, vector<8x8xf32> -> vector<8x8xf32>
    %123 = arith.addf %122, %3 : vector<8x8xf32>
    %cst_35 = arith.constant -1.000000e+06 : f32
    %124 = vector.broadcast %cst_35 : f32 to vector<8x8xf32>
    %125 = arith.maximumf %123, %124 : vector<8x8xf32>
    %cst_36 = arith.constant dense<0xFF800000> : vector<8xf32>
    %126 = vector.multi_reduction <maximumf>, %125, %cst_36 [1] : vector<8x8xf32> to vector<8xf32>
    %127 = vector.shape_cast %126 : vector<8xf32> to vector<8x1xf32>
    %128 = vector.broadcast %127 : vector<8x1xf32> to vector<8x8xf32>
    %129 = arith.subf %125, %128 : vector<8x8xf32>
    %130 = math.exp %129 : vector<8x8xf32>
    %cst_37 = arith.constant dense<0.000000e+00> : vector<8xf32>
    %131 = vector.multi_reduction <add>, %130, %cst_37 [1] : vector<8x8xf32> to vector<8xf32>
    %132 = vector.shape_cast %131 : vector<8xf32> to vector<8x1xf32>
    %133 = vector.broadcast %132 : vector<8x1xf32> to vector<8x8xf32>
    %134 = arith.divf %130, %133 : vector<8x8xf32>
    %135 = arith.truncf %134 : vector<8x8xf32> to vector<8x8xbf16>
    %136 = arith.truncf %119 : vector<8x8xf32> to vector<8x8xbf16>
    %cst_38 = arith.constant dense<0.000000e+00> : vector<8x8xf32>
    %137 = tpu.matmul %135, %136, %cst_38 {dimension_numbers = #tpu.dot_dimension_numbers<[1], [0], [0], [1], [0, 0, 1, 1], [], []>} : vector<8x8xbf16>, vector<8x8xbf16>, vector<8x8xf32> -> vector<8x8xf32>
    %138 = vector.extract_strided_slice %24 {offsets = [0, 24], sizes = [8, 8], strides = [1, 1]} : vector<8x32xf32> to vector<8x8xf32>
    %139 = vector.extract_strided_slice %138 {offsets = [0, 4], sizes = [8, 4], strides = [1, 1]} : vector<8x8xf32> to vector<8x4xf32>
    %cst_39 = arith.constant 0.000000e+00 : f32
    %140 = vector.broadcast %cst_39 : f32 to vector<8x4xf32>
    %141 = arith.subf %140, %139 : vector<8x4xf32>
    %142 = vector.extract_strided_slice %138 {offsets = [0, 0], sizes = [8, 4], strides = [1, 1]} : vector<8x8xf32> to vector<8x4xf32>
    %143 = tpu.concatenate %141, %142 in 1 : vector<8x4xf32>, vector<8x4xf32> -> vector<8x8xf32>
    %144 = arith.mulf %138, %5 : vector<8x8xf32>
    %145 = arith.mulf %143, %7 : vector<8x8xf32>
    %146 = arith.addf %144, %145 : vector<8x8xf32>
    %147 = vector.extract_strided_slice %25 {offsets = [0, 24], sizes = [8, 8], strides = [1, 1]} : vector<8x32xf32> to vector<8x8xf32>
    %148 = vector.extract_strided_slice %147 {offsets = [0, 4], sizes = [8, 4], strides = [1, 1]} : vector<8x8xf32> to vector<8x4xf32>
    %cst_40 = arith.constant 0.000000e+00 : f32
    %149 = vector.broadcast %cst_40 : f32 to vector<8x4xf32>
    %150 = arith.subf %149, %148 : vector<8x4xf32>
    %151 = vector.extract_strided_slice %147 {offsets = [0, 0], sizes = [8, 4], strides = [1, 1]} : vector<8x8xf32> to vector<8x4xf32>
    %152 = tpu.concatenate %150, %151 in 1 : vector<8x4xf32>, vector<8x4xf32> -> vector<8x8xf32>
    %153 = arith.mulf %147, %5 : vector<8x8xf32>
    %154 = arith.mulf %152, %7 : vector<8x8xf32>
    %155 = arith.addf %153, %154 : vector<8x8xf32>
    %156 = vector.extract_strided_slice %26 {offsets = [0, 24], sizes = [8, 8], strides = [1, 1]} : vector<8x32xf32> to vector<8x8xf32>
    %157 = arith.truncf %146 : vector<8x8xf32> to vector<8x8xbf16>
    %158 = arith.truncf %155 : vector<8x8xf32> to vector<8x8xbf16>
    %cst_41 = arith.constant dense<0.000000e+00> : vector<8x8xf32>
    %159 = tpu.matmul %157, %158, %cst_41 {dimension_numbers = #tpu.dot_dimension_numbers<[1], [1], [0], [0], [0, 0, 1, 0], [], []>} : vector<8x8xbf16>, vector<8x8xbf16>, vector<8x8xf32> -> vector<8x8xf32>
    %160 = arith.addf %159, %3 : vector<8x8xf32>
    %cst_42 = arith.constant -1.000000e+06 : f32
    %161 = vector.broadcast %cst_42 : f32 to vector<8x8xf32>
    %162 = arith.maximumf %160, %161 : vector<8x8xf32>
    %cst_43 = arith.constant dense<0xFF800000> : vector<8xf32>
    %163 = vector.multi_reduction <maximumf>, %162, %cst_43 [1] : vector<8x8xf32> to vector<8xf32>
    %164 = vector.shape_cast %163 : vector<8xf32> to vector<8x1xf32>
    %165 = vector.broadcast %164 : vector<8x1xf32> to vector<8x8xf32>
    %166 = arith.subf %162, %165 : vector<8x8xf32>
    %167 = math.exp %166 : vector<8x8xf32>
    %cst_44 = arith.constant dense<0.000000e+00> : vector<8xf32>
    %168 = vector.multi_reduction <add>, %167, %cst_44 [1] : vector<8x8xf32> to vector<8xf32>
    %169 = vector.shape_cast %168 : vector<8xf32> to vector<8x1xf32>
    %170 = vector.broadcast %169 : vector<8x1xf32> to vector<8x8xf32>
    %171 = arith.divf %167, %170 : vector<8x8xf32>
    %172 = arith.truncf %171 : vector<8x8xf32> to vector<8x8xbf16>
    %173 = arith.truncf %156 : vector<8x8xf32> to vector<8x8xbf16>
    %cst_45 = arith.constant dense<0.000000e+00> : vector<8x8xf32>
    %174 = tpu.matmul %172, %173, %cst_45 {dimension_numbers = #tpu.dot_dimension_numbers<[1], [0], [0], [1], [0, 0, 1, 1], [], []>} : vector<8x8xbf16>, vector<8x8xbf16>, vector<8x8xf32> -> vector<8x8xf32>
    %175 = tpu.concatenate %63, %100, %137, %174 in 1 : vector<8x8xf32>, vector<8x8xf32>, vector<8x8xf32>, vector<8x8xf32> -> vector<8x32xf32>
    %176 = arith.truncf %175 : vector<8x32xf32> to vector<8x32xbf16>
    %c0_46 = arith.constant 0 : index
    %c0_47 = arith.constant 0 : index
    %177 = vector.load %arg8[%c0_46, %c0_47] : memref<32x32xbf16, #tpu.memory_space<vmem>>, vector<32x32xbf16>
    %cst_48 = arith.constant dense<0.000000e+00> : vector<8x32xf32>
    %178 = tpu.matmul %176, %177, %cst_48 {dimension_numbers = #tpu.dot_dimension_numbers<[1], [0], [0], [1], [0, 0, 1, 1], [], []>} : vector<8x32xbf16>, vector<32x32xbf16>, vector<8x32xf32> -> vector<8x32xf32>
    %179 = arith.addf %1, %178 : vector<8x32xf32>
    %180 = arith.mulf %179, %179 : vector<8x32xf32>
    %cst_49 = arith.constant dense<0.000000e+00> : vector<8xf32>
    %181 = vector.multi_reduction <add>, %180, %cst_49 [1] : vector<8x32xf32> to vector<8xf32>
    %182 = vector.shape_cast %181 : vector<8xf32> to vector<8x1xf32>
    %cst_50 = arith.constant 3.200000e+01 : f32
    %183 = vector.broadcast %cst_50 : f32 to vector<8x1xf32>
    %184 = arith.divf %182, %183 : vector<8x1xf32>
    %cst_51 = arith.constant 9.99999997E-7 : f32
    %185 = vector.broadcast %cst_51 : f32 to vector<8x1xf32>
    %186 = arith.addf %184, %185 : vector<8x1xf32>
    %187 = math.rsqrt %186 : vector<8x1xf32>
    %188 = vector.broadcast %187 : vector<8x1xf32> to vector<8x32xf32>
    %189 = arith.mulf %179, %188 : vector<8x32xf32>
    %c0_52 = arith.constant 0 : index
    %c0_53 = arith.constant 0 : index
    %190 = vector.load %arg6[%c0_52, %c0_53] : memref<1x32xf32, #tpu.memory_space<vmem>>, vector<1x32xf32>
    %191 = vector.broadcast %190 : vector<1x32xf32> to vector<8x32xf32>
    %192 = arith.mulf %189, %191 : vector<8x32xf32>
    %193 = arith.truncf %192 : vector<8x32xf32> to vector<8x32xbf16>
    %c0_54 = arith.constant 0 : index
    %c0_55 = arith.constant 0 : index
    %194 = vector.load %arg9[%c0_54, %c0_55] : memref<32x128xbf16, #tpu.memory_space<vmem>>, vector<32x128xbf16>
    %cst_56 = arith.constant dense<0.000000e+00> : vector<8x128xf32>
    %195 = tpu.matmul %193, %194, %cst_56 {dimension_numbers = #tpu.dot_dimension_numbers<[1], [0], [0], [1], [0, 0, 1, 1], [], []>} : vector<8x32xbf16>, vector<32x128xbf16>, vector<8x128xf32> -> vector<8x128xf32>
    %196 = vector.extract_strided_slice %195 {offsets = [0, 0], sizes = [8, 64], strides = [1, 1]} : vector<8x128xf32> to vector<8x64xf32>
    %197 = vector.extract_strided_slice %195 {offsets = [0, 64], sizes = [8, 64], strides = [1, 1]} : vector<8x128xf32> to vector<8x64xf32>
    %198 = arith.negf %196 : vector<8x64xf32>
    %199 = math.exp %198 : vector<8x64xf32>
    %cst_57 = arith.constant 1.000000e+00 : f32
    %200 = vector.broadcast %cst_57 : f32 to vector<8x64xf32>
    %201 = arith.addf %200, %199 : vector<8x64xf32>
    %202 = arith.divf %200, %201 : vector<8x64xf32>
    %203 = arith.mulf %196, %202 : vector<8x64xf32>
    %204 = arith.mulf %203, %197 : vector<8x64xf32>
    %205 = arith.truncf %204 : vector<8x64xf32> to vector<8x64xbf16>
    %c0_58 = arith.constant 0 : index
    %c0_59 = arith.constant 0 : index
    %206 = vector.load %arg10[%c0_58, %c0_59] : memref<64x32xbf16, #tpu.memory_space<vmem>>, vector<64x32xbf16>
    %cst_60 = arith.constant dense<0.000000e+00> : vector<8x32xf32>
    %207 = tpu.matmul %205, %206, %cst_60 {dimension_numbers = #tpu.dot_dimension_numbers<[1], [0], [0], [1], [0, 0, 1, 1], [], []>} : vector<8x64xbf16>, vector<64x32xbf16>, vector<8x32xf32> -> vector<8x32xf32>
    %208 = arith.addf %179, %207 : vector<8x32xf32>
    %c0_61 = arith.constant 0 : index
    %c0_62 = arith.constant 0 : index
    %c0_63 = arith.constant 0 : index
    %209 = vector.load %arg11[%c0_61, %c0_62, %c0_63] : memref<1x8x32xf32, #tpu.memory_space<vmem>>, vector<1x8x32xf32>
    %210 = vector.shape_cast %209 : vector<1x8x32xf32> to vector<8x32xf32>
    %211 = vector.shape_cast %208 : vector<8x32xf32> to vector<1x8x32xf32>
    tpu.vector_store %arg11[%c0_61, %c0_62, %c0_63], %211 {strides = array<i32>} : memref<1x8x32xf32, #tpu.memory_space<vmem>>, vector<1x8x32xf32>,
    return
  }
  func.func @transform_0(%arg0: i32) -> (i32, i32, i32) {
    %c0_i32 = arith.constant 0 : i32
    %c0_i32_0 = arith.constant 0 : i32
    %c0_i32_1 = arith.constant 0 : i32
    return %arg0, %c0_i32, %c0_i32_0 : i32, i32, i32
  }
  func.func @transform_1(%arg0: i32) -> (i32, i32, i32) {
    %c0_i32 = arith.constant 0 : i32
    %c0_i32_0 = arith.constant 0 : i32
    %c0_i32_1 = arith.constant 0 : i32
    return %arg0, %c0_i32, %c0_i32_0 : i32, i32, i32
  }
  func.func @transform_2(%arg0: i32) -> (i32, i32, i32) {
    %c0_i32 = arith.constant 0 : i32
    %c0_i32_0 = arith.constant 0 : i32
    %c0_i32_1 = arith.constant 0 : i32
    return %arg0, %c0_i32, %c0_i32_0 : i32, i32, i32
  }
  func.func @transform_3(%arg0: i32) -> (i32, i32, i32) {
    %c0_i32 = arith.constant 0 : i32
    %c0_i32_0 = arith.constant 0 : i32
    %c0_i32_1 = arith.constant 0 : i32
    return %arg0, %c0_i32, %c0_i32_0 : i32, i32, i32
  }
  func.func @transform_4(%arg0: i32) -> (i32, i32) {
    %c0_i32 = arith.constant 0 : i32
    %c0_i32_0 = arith.constant 0 : i32
    %c0_i32_1 = arith.constant 0 : i32
    return %c0_i32, %c0_i32_0 : i32, i32
  }
  func.func @transform_5(%arg0: i32) -> (i32, i32) {
    %c0_i32 = arith.constant 0 : i32
    %c0_i32_0 = arith.constant 0 : i32
    %c0_i32_1 = arith.constant 0 : i32
    return %c0_i32, %c0_i32_0 : i32, i32
  }
  func.func @transform_6(%arg0: i32) -> (i32, i32) {
    %c0_i32 = arith.constant 0 : i32
    %c0_i32_0 = arith.constant 0 : i32
    %c0_i32_1 = arith.constant 0 : i32
    return %c0_i32, %c0_i32_0 : i32, i32
  }
  func.func @transform_7(%arg0: i32) -> (i32, i32) {
    %c0_i32 = arith.constant 0 : i32
    %c0_i32_0 = arith.constant 0 : i32
    %c0_i32_1 = arith.constant 0 : i32
    return %c0_i32, %c0_i32_0 : i32, i32
  }
  func.func @transform_8(%arg0: i32) -> (i32, i32) {
    %c0_i32 = arith.constant 0 : i32
    %c0_i32_0 = arith.constant 0 : i32
    %c0_i32_1 = arith.constant 0 : i32
    return %c0_i32, %c0_i32_0 : i32, i32
  }
  func.func @transform_9(%arg0: i32) -> (i32, i32) {
    %c0_i32 = arith.constant 0 : i32
    %c0_i32_0 = arith.constant 0 : i32
    %c0_i32_1 = arith.constant 0 : i32
    return %c0_i32, %c0_i32_0 : i32, i32
  }
  func.func @transform_10(%arg0: i32) -> (i32, i32, i32) {
    %c0_i32 = arith.constant 0 : i32
    %c0_i32_0 = arith.constant 0 : i32
    %c0_i32_1 = arith.constant 0 : i32
    return %arg0, %c0_i32, %c0_i32_0 : i32, i32, i32
  }
}

</mosaic_0001>

<llo_original>
// kernel: tpu_custom_call.1
$region0: #{tpu_custom_call.1}
  #allocation0 [shape = 'u32[]', space=smem, size = 0x4, offset = 0x4, fixed_abs, tag = 'smem constant byte address 0x4 - core index']
  #allocation1 [shape = 'u32[144,128]{1,0:T(1,128)}', space=vmem, size = 0x12000, scoped, tag = 'internal scratch']
  %s0 = inlined_call_operand.vmem [shape: f32[2,8,32], index: 0, kind: input, shape index: {}]
  %s1 = inlined_call_operand.vmem [shape: f32[2,8,8], index: 1, kind: input, shape index: {}]
  %s2 = inlined_call_operand.vmem [shape: f32[2,8,8], index: 2, kind: input, shape index: {}]
  %s3 = inlined_call_operand.hbm [shape: f32[2,8,8], index: 3, kind: input, shape index: {}]
  %s4 = inlined_call_operand.vmem [shape: f32[1,32], index: 4, kind: input, shape index: {}]
  %s5 = inlined_call_operand.vmem [shape: f32[1,32], index: 5, kind: input, shape index: {}]
  %s6 = inlined_call_operand.hbm [shape: bf16[32,96], index: 6, kind: input, shape index: {}]
  %s7 = inlined_call_operand.hbm [shape: bf16[32,32], index: 7, kind: input, shape index: {}]
  %s8 = inlined_call_operand.hbm [shape: bf16[32,128], index: 8, kind: input, shape index: {}]
  %s9 = inlined_call_operand.vmem [shape: bf16[64,32], index: 9, kind: input, shape index: {}]
  %s10 = inlined_call_operand.hbm [shape: f32[2,8,32], index: 10, kind: output, shape index: {}]
  %s11 = sld [smem:[#allocation0]]
  $region89: #{tpu_custom_call.1} parent=0
    _
  %s13 = ssub.s32 1, %s11
  %s14 = scalar_select 0, %s13, %s11
  $region1: #{tpu_custom_call.1} parent=0
    #allocation2 [shape = 'u8[8192]{0}', space=vmem, size = 0x2000, scoped, tag = 'input window, operand 3']
    #allocation3 [shape = 's32[2]{0}', space=sflag, size = 0x8, scoped, tag = 'scoped memory for tpu_custom_call.1']
    #allocation4 [shape = 's32[2]{0}', space=sflag, size = 0x8, scoped, tag = 'scoped memory for tpu_custom_call.1']
    #allocation5 [shape = 'u8[8192]{0}', space=vmem, size = 0x2000, scoped, tag = 'input window, operand 6, single buffered']
    #allocation6 [shape = 's32[1]{0}', space=sflag, size = 0x4, scoped, tag = 'scoped memory for tpu_custom_call.1']
    #allocation7 [shape = 'u8[8192]{0}', space=vmem, size = 0x2000, scoped, tag = 'input window, operand 7, single buffered']
    #allocation8 [shape = 'u8[8192]{0}', space=vmem, size = 0x2000, scoped, tag = 'input window, operand 8, single buffered']
    #allocation9 [shape = 's32[1]{0}', space=sflag, size = 0x4, scoped, tag = 'scoped memory for tpu_custom_call.1']
    #allocation10 [shape = 'u8[8192]{0}', space=vmem, size = 0x2000, scoped, tag = 'output window, operand 0']
    %15 = vsyncpa [#allocation3], 0
    %s16 = scalar_lea.sflag [#allocation3], 1
    %17 = vsyncpa %s16, 0
    %18 = vsyncpa [#allocation6], 0
    %19 = vsyncpa [#allocation9], 0
    %20 = vsyncpa [#allocation4], 0
    %s21 = scalar_lea.sflag [#allocation4], 1
    %22 = vsyncpa %s21, 0
    loop: start=0, step=1, limit=4
    $region2: #{tpu_custom_call.1} parent=1 // loop_pre_header
      _
    $region3: #{tpu_custom_call.1} parent=1 // loop_header
      %s24 = sphi 0, %s28
      %p25 = scmp.ge.s32.totalorder %s24, 4
      %s34 = sphi 0, %s36
      %s37 = sphi 0, %s34
      %s38 = sphi 0, %s37
      %s54 = sphi 0, %s38
      %s60 = sphi 0, %s62
      %s63 = sphi 0, %s60
      %s64 = sphi 0, %s63
      %s80 = sphi 0, %s64
      %s86 = sphi 0, %s88
      %s89 = sphi 0, %s86
      %s90 = sphi 0, %s89
      %s106 = sphi 0, %s90
      %s112 = sphi 0, %s114
      %s115 = sphi 0, %s112
      %s116 = sphi 0, %s115
      %s132 = sphi 0, %s116
      %s136 = sphi 0, %s136
      %s138 = sphi 0, %s136
      %s139 = sphi 0, %s138
      %s153 = sphi 0, %s139
      %s157 = sphi 0, %s157
      %s159 = sphi 0, %s157
      %s160 = sphi 0, %s159
      %s174 = sphi 0, %s160
      %s178 = sphi 0, %s178
      %s180 = sphi 0, %s178
      %s181 = sphi 0, %s180
      %s195 = sphi 0, %s181
      %s199 = sphi 0, %s199
      %s201 = sphi 0, %s199
      %s202 = sphi 0, %s201
      %s216 = sphi 0, %s202
      %s220 = sphi 0, %s220
      %s222 = sphi 0, %s220
      %s223 = sphi 0, %s222
      %s237 = sphi 0, %s223
      %s241 = sphi 0, %s241
      %s243 = sphi 0, %s241
      %s244 = sphi 0, %s243
      %s258 = sphi 0, %s244
      %s264 = sphi 0, %s266
      %s267 = sphi 0, %s264
      %s268 = sphi 0, %s267
      %s284 = sphi 0, %s268
    $region4: #{tpu_custom_call.1} parent=1 // loop_header_branch
      %27 = sbr.rel (%p25) target = $region8
    $region5: #{tpu_custom_call.1} parent=1 // loop_body
      %s29 = ssub.s32 %s24, 1
      %s30 = ssub.s32 %s24, 2
      %s31 = sadd.s32 %s24, 1
      %s32 = ssub.s32 %s24, %s31
      %p33 = scmp.eq.s32.totalorder %s32, 0
      %s35 = sadd.s32 %s34, 1
      %s36 = scalar_select %p33, %s34, %s35
      %p39 = pneg %p33
      %p40 = scmp.eq.s32.totalorder %s24, 1
      %p41 = por %p39, %p40
      %p42 = scmp.ne.s32.totalorder %s34, %s37
      %p43 = scmp.eq.s32.totalorder %s24, 0
      %p44 = por %p42, %p43
      %p45 = scmp.ne.s32.totalorder %s34, %s37
      %p46 = scmp.eq.s32.totalorder %s29, 1
      %p47 = por %p45, %p46
      %p48 = scmp.ne.s32.totalorder %s37, %s38
      %p49 = scmp.eq.s32.totalorder %s29, 0
      %p50 = por %p48, %p49
      %p51 = scmp.ne.s32.totalorder %s37, %s38
      %p52 = scmp.eq.s32.totalorder %s30, 1
      %p53 = por %p51, %p52
      %p55 = scmp.ne.s32.totalorder %s38, %s54
      %p56 = scmp.eq.s32.totalorder %s30, 0
      %p57 = por %p55, %p56
      %s58 = ssub.s32 %s24, %s31
      %p59 = scmp.eq.s32.totalorder %s58, 0
      %s61 = sadd.s32 %s60, 1
      %s62 = scalar_select %p59, %s60, %s61
      %p65 = pneg %p59
      %p66 = scmp.eq.s32.totalorder %s24, 1
      %p67 = por %p65, %p66
      %p68 = scmp.ne.s32.totalorder %s60, %s63
      %p69 = scmp.eq.s32.totalorder %s24, 0
      %p70 = por %p68, %p69
      %p71 = scmp.ne.s32.totalorder %s60, %s63
      %p72 = scmp.eq.s32.totalorder %s29, 1
      %p73 = por %p71, %p72
      %p74 = scmp.ne.s32.totalorder %s63, %s64
      %p75 = scmp.eq.s32.totalorder %s29, 0
      %p76 = por %p74, %p75
      %p77 = scmp.ne.s32.totalorder %s63, %s64
      %p78 = scmp.eq.s32.totalorder %s30, 1
      %p79 = por %p77, %p78
      %p81 = scmp.ne.s32.totalorder %s64, %s80
      %p82 = scmp.eq.s32.totalorder %s30, 0
      %p83 = por %p81, %p82
      %s84 = ssub.s32 %s24, %s31
      %p85 = scmp.eq.s32.totalorder %s84, 0
      %s87 = sadd.s32 %s86, 1
      %s88 = scalar_select %p85, %s86, %s87
      %p91 = pneg %p85
      %p92 = scmp.eq.s32.totalorder %s24, 1
      %p93 = por %p91, %p92
      %p94 = scmp.ne.s32.totalorder %s86, %s89
      %p95 = scmp.eq.s32.totalorder %s24, 0
      %p96 = por %p94, %p95
      %p97 = scmp.ne.s32.totalorder %s86, %s89
      %p98 = scmp.eq.s32.totalorder %s29, 1
      %p99 = por %p97, %p98
      %p100 = scmp.ne.s32.totalorder %s89, %s90
      %p101 = scmp.eq.s32.totalorder %s29, 0
      %p102 = por %p100, %p101
      %p103 = scmp.ne.s32.totalorder %s89, %s90
      %p104 = scmp.eq.s32.totalorder %s30, 1
      %p105 = por %p103, %p104
      %p107 = scmp.ne.s32.totalorder %s90, %s106
      %p108 = scmp.eq.s32.totalorder %s30, 0
      %p109 = por %p107, %p108
      %s110 = ssub.s32 %s24, %s31
      %p111 = scmp.eq.s32.totalorder %s110, 0
      %s113 = sadd.s32 %s112, 1
      %s114 = scalar_select %p111, %s112, %s113
      %p117 = pneg %p111
      %p118 = scmp.eq.s32.totalorder %s24, 1
      %p119 = por %p117, %p118
      %p120 = scmp.ne.s32.totalorder %s112, %s115
      %p121 = scmp.eq.s32.totalorder %s24, 0
      %p122 = por %p120, %p121
      %p123 = scmp.ne.s32.totalorder %s112, %s115
      %p124 = scmp.eq.s32.totalorder %s29, 1
      %p125 = por %p123, %p124
      %p126 = scmp.ne.s32.totalorder %s115, %s116
      %p127 = scmp.eq.s32.totalorder %s29, 0
      %p128 = por %p126, %p127
      %p129 = scmp.ne.s32.totalorder %s115, %s116
      %p130 = scmp.eq.s32.totalorder %s30, 1
      %p131 = por %p129, %p130
      %p133 = scmp.ne.s32.totalorder %s116, %s132
      %p134 = scmp.eq.s32.totalorder %s30, 0
      %p135 = por %p133, %p134
      %s137 = sadd.s32 %s136, 1
      %p140 = scmp.eq.s32.totalorder %s24, 1
      %p141 = scmp.ne.s32.totalorder %s136, %s138
      %p142 = scmp.eq.s32.totalorder %s24, 0
      %p143 = por %p141, %p142
      %p144 = scmp.ne.s32.totalorder %s136, %s138
      %p145 = scmp.eq.s32.totalorder %s29, 1
      %p146 = por %p144, %p145
      %p147 = scmp.ne.s32.totalorder %s138, %s139
      %p148 = scmp.eq.s32.totalorder %s29, 0
      %p149 = por %p147, %p148
      %p150 = scmp.ne.s32.totalorder %s138, %s139
      %p151 = scmp.eq.s32.totalorder %s30, 1
      %p152 = por %p150, %p151
      %p154 = scmp.ne.s32.totalorder %s139, %s153
      %p155 = scmp.eq.s32.totalorder %s30, 0
      %p156 = por %p154, %p155
      %s158 = sadd.s32 %s157, 1
      %p161 = scmp.eq.s32.totalorder %s24, 1
      %p162 = scmp.ne.s32.totalorder %s157, %s159
      %p163 = scmp.eq.s32.totalorder %s24, 0
      %p164 = por %p162, %p163
      %p165 = scmp.ne.s32.totalorder %s157, %s159
      %p166 = scmp.eq.s32.totalorder %s29, 1
      %p167 = por %p165, %p166
      %p168 = scmp.ne.s32.totalorder %s159, %s160
      %p169 = scmp.eq.s32.totalorder %s29, 0
      %p170 = por %p168, %p169
      %p171 = scmp.ne.s32.totalorder %s159, %s160
      %p172 = scmp.eq.s32.totalorder %s30, 1
      %p173 = por %p171, %p172
      %p175 = scmp.ne.s32.totalorder %s160, %s174
      %p176 = scmp.eq.s32.totalorder %s30, 0
      %p177 = por %p175, %p176
      %s179 = sadd.s32 %s178, 1
      %p182 = scmp.eq.s32.totalorder %s24, 1
      %p183 = scmp.ne.s32.totalorder %s178, %s180
      %p184 = scmp.eq.s32.totalorder %s24, 0
      %p185 = por %p183, %p184
      %p186 = scmp.ne.s32.totalorder %s178, %s180
      %p187 = scmp.eq.s32.totalorder %s29, 1
      %p188 = por %p186, %p187
      %p189 = scmp.ne.s32.totalorder %s180, %s181
      %p190 = scmp.eq.s32.totalorder %s29, 0
      %p191 = por %p189, %p190
      %p192 = scmp.ne.s32.totalorder %s180, %s181
      %p193 = scmp.eq.s32.totalorder %s30, 1
      %p194 = por %p192, %p193
      %p196 = scmp.ne.s32.totalorder %s181, %s195
      %p197 = scmp.eq.s32.totalorder %s30, 0
      %p198 = por %p196, %p197
      %s200 = sadd.s32 %s199, 1
      %p203 = scmp.eq.s32.totalorder %s24, 1
      %p204 = scmp.ne.s32.totalorder %s199, %s201
      %p205 = scmp.eq.s32.totalorder %s24, 0
      %p206 = por %p204, %p205
      %p207 = scmp.ne.s32.totalorder %s199, %s201
      %p208 = scmp.eq.s32.totalorder %s29, 1
      %p209 = por %p207, %p208
      %p210 = scmp.ne.s32.totalorder %s201, %s202
      %p211 = scmp.eq.s32.totalorder %s29, 0
      %p212 = por %p210, %p211
      %p213 = scmp.ne.s32.totalorder %s201, %s202
      %p214 = scmp.eq.s32.totalorder %s30, 1
      %p215 = por %p213, %p214
      %p217 = scmp.ne.s32.totalorder %s202, %s216
      %p218 = scmp.eq.s32.totalorder %s30, 0
      %p219 = por %p217, %p218
      %s221 = sadd.s32 %s220, 1
      %p224 = scmp.eq.s32.totalorder %s24, 1
      %p225 = scmp.ne.s32.totalorder %s220, %s222
      %p226 = scmp.eq.s32.totalorder %s24, 0
      %p227 = por %p225, %p226
      %p228 = scmp.ne.s32.totalorder %s220, %s222
      %p229 = scmp.eq.s32.totalorder %s29, 1
      %p230 = por %p228, %p229
      %p231 = scmp.ne.s32.totalorder %s222, %s223
      %p232 = scmp.eq.s32.totalorder %s29, 0
      %p233 = por %p231, %p232
      %p234 = scmp.ne.s32.totalorder %s222, %s223
      %p235 = scmp.eq.s32.totalorder %s30, 1
      %p236 = por %p234, %p235
      %p238 = scmp.ne.s32.totalorder %s223, %s237
      %p239 = scmp.eq.s32.totalorder %s30, 0
      %p240 = por %p238, %p239
      %s242 = sadd.s32 %s241, 1
      %p245 = scmp.eq.s32.totalorder %s24, 1
      %p246 = scmp.ne.s32.totalorder %s241, %s243
      %p247 = scmp.eq.s32.totalorder %s24, 0
      %p248 = por %p246, %p247
      %p249 = scmp.ne.s32.totalorder %s241, %s243
      %p250 = scmp.eq.s32.totalorder %s29, 1
      %p251 = por %p249, %p250
      %p252 = scmp.ne.s32.totalorder %s243, %s244
      %p253 = scmp.eq.s32.totalorder %s29, 0
      %p254 = por %p252, %p253
      %p255 = scmp.ne.s32.totalorder %s243, %s244
      %p256 = scmp.eq.s32.totalorder %s30, 1
      %p257 = por %p255, %p256
      %p259 = scmp.ne.s32.totalorder %s244, %s258
      %p260 = scmp.eq.s32.totalorder %s30, 0
      %p261 = por %p259, %p260
      %s262 = ssub.s32 %s24, %s31
      %p263 = scmp.eq.s32.totalorder %s262, 0
      %s265 = sadd.s32 %s264, 1
      %s266 = scalar_select %p263, %s264, %s265
      %p269 = pneg %p263
      %p270 = scmp.eq.s32.totalorder %s24, 1
      %p271 = por %p269, %p270
      %p272 = scmp.ne.s32.totalorder %s264, %s267
      %p273 = scmp.eq.s32.totalorder %s24, 0
      %p274 = por %p272, %p273
      %p275 = scmp.ne.s32.totalorder %s264, %s267
      %p276 = scmp.eq.s32.totalorder %s29, 1
      %p277 = por %p275, %p276
      %p278 = scmp.ne.s32.totalorder %s267, %s268
      %p279 = scmp.eq.s32.totalorder %s29, 0
      %p280 = por %p278, %p279
      %p281 = scmp.ne.s32.totalorder %s267, %s268
      %p282 = scmp.eq.s32.totalorder %s30, 1
      %p283 = por %p281, %p282
      %p285 = scmp.ne.s32.totalorder %s268, %s284
      %p286 = scmp.eq.s32.totalorder %s30, 0
      %p287 = por %p285, %p286
      %p288 = scmp.le.s32.totalorder 1, %s24
      %p289 = scmp.lt.s32.totalorder %s24, 3
      %p290 = pnand %p288, %p289
      %p291 = pneg %p290
      // Predicated region
      $region9: #{tpu_custom_call.1} parent=5 // pred_check
        _
      $region10: #{tpu_custom_call.1} parent=5 // pred_check_branch
        %293 = sbr.rel (%p290) target = $region12
      $region11: #{tpu_custom_call.1} parent=5 // pred_region
        %s294 = ssub.s32 %s24, 1
        // Predicated region
        $region13: #{tpu_custom_call.1} parent=11 // pred_check
          %p295 = pneg %p149
        $region14: #{tpu_custom_call.1} parent=11 // pred_check_branch
          %297 = sbr.rel (%p295) target = $region16
        $region15: #{tpu_custom_call.1} parent=11 // pred_region
          _
        $region16: #{tpu_custom_call.1} parent=11 // pred_fallthru
          _
        // Predicated region
        $region17: #{tpu_custom_call.1} parent=11 // pred_check
          %p298 = pneg %p170
        $region18: #{tpu_custom_call.1} parent=11 // pred_check_branch
          %300 = sbr.rel (%p298) target = $region20
        $region19: #{tpu_custom_call.1} parent=11 // pred_region
          _
        $region20: #{tpu_custom_call.1} parent=11 // pred_fallthru
          _
        // Predicated region
        $region21: #{tpu_custom_call.1} parent=11 // pred_check
          %p301 = pneg %p191
        $region22: #{tpu_custom_call.1} parent=11 // pred_check_branch
          %303 = sbr.rel (%p301) target = $region24
        $region23: #{tpu_custom_call.1} parent=11 // pred_region
          %s305 = ssub.s32 256, 256
          %306 = vsyncadd [#allocation6], %s305
          %s307 = sshll.u32 [#allocation5], 4
          %s308 = int_to_ptr.vmem [resolvable:$true] %s307
          %313 = dma.hbm_to_vmem [thread:$0]  %s6, 256, %s308, [#allocation6], 64, 64, 4
        $region24: #{tpu_custom_call.1} parent=11 // pred_fallthru
          _
        // Predicated region
        $region25: #{tpu_custom_call.1} parent=11 // pred_check
          %p314 = pneg %p212
        $region26: #{tpu_custom_call.1} parent=11 // pred_check_branch
          %316 = sbr.rel (%p314) target = $region28
        $region27: #{tpu_custom_call.1} parent=11 // pred_region
          %s318 = ssub.s32 256, 256
          %319 = vsyncadd [#allocation6], %s318
          %s320 = sshll.u32 [#allocation7], 4
          %s321 = int_to_ptr.vmem [resolvable:$true] %s320
          %326 = dma.hbm_to_vmem [thread:$0]  %s7, 256, %s321, [#allocation6], 64, 64, 4
        $region28: #{tpu_custom_call.1} parent=11 // pred_fallthru
          _
        // Predicated region
        $region29: #{tpu_custom_call.1} parent=11 // pred_check
          %p327 = pneg %p233
        $region30: #{tpu_custom_call.1} parent=11 // pred_check_branch
          %329 = sbr.rel (%p327) target = $region32
        $region31: #{tpu_custom_call.1} parent=11 // pred_region
          %s331 = ssub.s32 256, 256
          %332 = vsyncadd [#allocation9], %s331
          %s333 = sshll.u32 [#allocation8], 4
          %s334 = int_to_ptr.vmem [resolvable:$true] %s333
          %339 = dma.hbm_to_vmem [thread:$0]  %s8, 256, %s334, [#allocation9], 64, 64, 4
        $region32: #{tpu_custom_call.1} parent=11 // pred_fallthru
          _
        // Predicated region
        $region33: #{tpu_custom_call.1} parent=11 // pred_check
          %p340 = pneg %p254
        $region34: #{tpu_custom_call.1} parent=11 // pred_check_branch
          %342 = sbr.rel (%p340) target = $region36
        $region35: #{tpu_custom_call.1} parent=11 // pred_region
          _
        $region36: #{tpu_custom_call.1} parent=11 // pred_fallthru
          _
      $region12: #{tpu_custom_call.1} parent=5 // pred_fallthru
        _
      %p343 = scmp.lt.s32.totalorder %s24, 2
      // Predicated region
      $region37: #{tpu_custom_call.1} parent=5 // pred_check
        %p344 = pneg %p343
      $region38: #{tpu_custom_call.1} parent=5 // pred_check_branch
        %346 = sbr.rel (%p344) target = $region40
      $region39: #{tpu_custom_call.1} parent=5 // pred_region
        // Predicated region
        $region41: #{tpu_custom_call.1} parent=39 // pred_check
          %p347 = pneg %p44
        $region42: #{tpu_custom_call.1} parent=39 // pred_check_branch
          %349 = sbr.rel (%p347) target = $region44
        $region43: #{tpu_custom_call.1} parent=39 // pred_region
          %p350 = scmp.lt.s32.totalorder %s24, 1
          %s351 = scalar_select %p350, %s24, 1
          %s352 = smul.addr %s351, 8
          %s353 = scalar_lea.vmem %s0, %s352
        $region44: #{tpu_custom_call.1} parent=39 // pred_fallthru
          _
        // Predicated region
        $region45: #{tpu_custom_call.1} parent=39 // pred_check
          %p354 = pneg %p70
        $region46: #{tpu_custom_call.1} parent=39 // pred_check_branch
          %356 = sbr.rel (%p354) target = $region48
        $region47: #{tpu_custom_call.1} parent=39 // pred_region
          %p357 = scmp.lt.s32.totalorder %s24, 1
          %s358 = scalar_select %p357, %s24, 1
          %s359 = smul.addr %s358, 8
          %s360 = scalar_lea.vmem %s1, %s359
        $region48: #{tpu_custom_call.1} parent=39 // pred_fallthru
          _
        // Predicated region
        $region49: #{tpu_custom_call.1} parent=39 // pred_check
          %p361 = pneg %p96
        $region50: #{tpu_custom_call.1} parent=39 // pred_check_branch
          %363 = sbr.rel (%p361) target = $region52
        $region51: #{tpu_custom_call.1} parent=39 // pred_region
          %p364 = scmp.lt.s32.totalorder %s24, 1
          %s365 = scalar_select %p364, %s24, 1
          %s366 = smul.addr %s365, 8
          %s367 = scalar_lea.vmem %s2, %s366
        $region52: #{tpu_custom_call.1} parent=39 // pred_fallthru
          _
        // Predicated region
        $region53: #{tpu_custom_call.1} parent=39 // pred_check
          %p368 = pneg %p122
        $region54: #{tpu_custom_call.1} parent=39 // pred_check_branch
          %370 = sbr.rel (%p368) target = $region56
        $region55: #{tpu_custom_call.1} parent=39 // pred_region
          %s371 = sand.u32 %s112, 1
          %s372 = scalar_lea.sflag [#allocation3], %s371
          %s373 = sand.u32 %s112, 1
          %s374 = smul.addr %s373, 8
          %s375 = scalar_lea.vmem [#allocation2], %s374
          %s377 = ssub.s32 128, 128
          %378 = vsyncadd %s372, %s377
          %s379 = smul.addr %s24, 128
          %s380 = scalar_lea.hbm %s3, %s379
          %s382 = sshll.u32 %s375, 4
          %s383 = int_to_ptr.vmem [resolvable:$true] %s382
          %385 = dma.hbm_to_vmem [thread:$0]  %s380, 128, %s383, %s372
        $region56: #{tpu_custom_call.1} parent=39 // pred_fallthru
          _
      $region40: #{tpu_custom_call.1} parent=5 // pred_fallthru
        _
      %p386 = scmp.le.s32.totalorder 1, %s24
      %p387 = scmp.lt.s32.totalorder %s24, 3
      %p388 = pnand %p386, %p387
      %p389 = pneg %p388
      // Predicated region
      $region57: #{tpu_custom_call.1} parent=5 // pred_check
        _
      $region58: #{tpu_custom_call.1} parent=5 // pred_check_branch
        %391 = sbr.rel (%p388) target = $region60
      $region59: #{tpu_custom_call.1} parent=5 // pred_region
        %s392 = ssub.s32 %s24, 1
        %s393 = sand.u32 %s115, 1
        %s394 = scalar_lea.sflag [#allocation3], %s393
        %s395 = sand.u32 %s115, 1
        %s396 = smul.addr %s395, 8
        %s397 = scalar_lea.vmem [#allocation2], %s396
        // Predicated region
        $region61: #{tpu_custom_call.1} parent=59 // pred_check
          %p398 = pneg %p128
        $region62: #{tpu_custom_call.1} parent=59 // pred_check_branch
          %400 = sbr.rel (%p398) target = $region64
        $region63: #{tpu_custom_call.1} parent=59 // pred_region
          %401 = dma.done %s394, 128
        $region64: #{tpu_custom_call.1} parent=59 // pred_fallthru
          _
        // Predicated region
        $region65: #{tpu_custom_call.1} parent=59 // pred_check
          %p402 = pneg %p191
        $region66: #{tpu_custom_call.1} parent=59 // pred_check_branch
          %404 = sbr.rel (%p402) target = $region68
        $region67: #{tpu_custom_call.1} parent=59 // pred_region
          %405 = dma.done [#allocation6], 256
        $region68: #{tpu_custom_call.1} parent=59 // pred_fallthru
          _
        // Predicated region
        $region69: #{tpu_custom_call.1} parent=59 // pred_check
          %p406 = pneg %p212
        $region70: #{tpu_custom_call.1} parent=59 // pred_check_branch
          %408 = sbr.rel (%p406) target = $region72
        $region71: #{tpu_custom_call.1} parent=59 // pred_region
          %409 = dma.done [#allocation6], 256
        $region72: #{tpu_custom_call.1} parent=59 // pred_fallthru
          _
        // Predicated region
        $region73: #{tpu_custom_call.1} parent=59 // pred_check
          %p410 = pneg %p233
        $region74: #{tpu_custom_call.1} parent=59 // pred_check_branch
          %412 = sbr.rel (%p410) target = $region76
        $region75: #{tpu_custom_call.1} parent=59 // pred_region
          %413 = dma.done [#allocation9], 256
        $region76: #{tpu_custom_call.1} parent=59 // pred_fallthru
          _
        %p414 = scmp.lt.s32.totalorder %s29, 1
        %s415 = scalar_select %p414, %s29, 1
        %s416 = smul.addr %s415, 8
        %s417 = scalar_lea.vmem %s0, %s416
        %p418 = pneg %p50
        %p419 = pneg %p47
        %p420 = scmp.lt.s32.totalorder %s29, 1
        %s421 = scalar_select %p420, %s29, 1
        %s422 = smul.addr %s421, 8
        %s423 = scalar_lea.vmem %s1, %s422
        %p424 = pneg %p76
        %p425 = pneg %p73
        %p426 = scmp.lt.s32.totalorder %s29, 1
        %s427 = scalar_select %p426, %s29, 1
        %s428 = smul.addr %s427, 8
        %s429 = scalar_lea.vmem %s2, %s428
        %p430 = pneg %p102
        %p431 = pneg %p99
        %s432 = sand.u32 %s115, 1
        %s433 = scalar_lea.sflag [#allocation3], %s432
        %s434 = sand.u32 %s115, 1
        %s435 = smul.addr %s434, 8
        %s436 = scalar_lea.vmem [#allocation2], %s435
        %p437 = pneg %p128
        %p438 = pneg %p125
        %p439 = pneg %p149
        %p440 = pneg %p146
        %p441 = pneg %p170
        %p442 = pneg %p167
        %p443 = pneg %p191
        %p444 = pneg %p188
        %p445 = pneg %p212
        %p446 = pneg %p209
        %p447 = pneg %p233
        %p448 = pneg %p230
        %p449 = pneg %p254
        %p450 = pneg %p251
        %p451 = pneg %p280
        %p452 = pneg %p277
        %s453 = sand.u32 %s267, 1
        %s454 = scalar_lea.sflag [#allocation4], %s453
        %s455 = sand.u32 %s267, 1
        %s456 = smul.addr %s455, 8
        %s457 = scalar_lea.vmem [#allocation10], %s456
        %p458 = scmp.lt.s32.totalorder %s29, 1
        %s459 = scalar_select %p458, %s29, 1
        %s460 = smul.addr %s459, 8
        %s461 = scalar_lea.vmem %s0, %s460
        %p462 = scmp.lt.s32.totalorder %s29, 1
        %s463 = scalar_select %p462, %s29, 1
        %s464 = smul.addr %s463, 8
        %s465 = scalar_lea.vmem %s1, %s464
        %p466 = scmp.lt.s32.totalorder %s29, 1
        %s467 = scalar_select %p466, %s29, 1
        %s468 = smul.addr %s467, 8
        %s469 = scalar_lea.vmem %s2, %s468
        %v471 = vld [vmem:[%s461] sm:$0xff]
        %v472 = vld [vmem:[%s465] sm:$0xff]
        %v473 = vld [vmem:[%s469] sm:$0xff]
        %v474 = vld [vmem:[%s397] sm:$0xff]
        %v475 = vmul.f32 %v471, %v471
        %vm476 = vcmask 261120
        %v477 = vsel %vm476, %v475, 0.0
        %478 = vadd.xlane.f32.xlu0 %v477
        %v479 = vpop.xlane.xlu0 %478
        %v480 = vrcp.pop 32.0
        %v481 = vmul.f32 %v479, %v480
        %v482 = vadd.f32 %v481, 1e-06
        %v483 = vrsqrt.pop %v482
        %v484 = vmul.f32 %v471, %v483
        %v485 = vld [vmem:[%s4] sm:$0x1]
        %v487 = vlaneseq
        %v488 = vshrl.u32 %v487, 7
        %v489 = vsub.s32 0, %v488
        %v490 = vrot.slane %v485, %v489
        %v492 = vmul.f32 %v484, %v490
        %v493 = vpack.c.bf16 %v492, %v492
        %v494 = vld [vmem:[#allocation5] sm:$0xf]
        %v495 = vld [vmem:[#allocation5 + $0x4] sm:$0xf]
        %v496 = vld [vmem:[#allocation5 + $0x8] sm:$0xf]
        %v497 = vld [vmem:[#allocation5 + $0xc] sm:$0xf]
        %v502 = vunpack.c.l.b16 %v494
        %v503 = vunpack.c.l.b16 %v495
        %v504 = vunpack.c.l.b16 %v496
        %v505 = vunpack.c.l.b16 %v497
        %v506 = vpack.c.b16 %v503, %v502
        %v507 = vpack.c.b16 %v505, %v504
        %v511 = vsel %vm476, %v493, 0
        %513 = vmatprep.subr.bf16.mxu0 0
        %514 = vmatpush1.bf16.msra.mxu0 %v506
        %515 = vmatprep.subr.bf16.mxu0 0
        %516 = vmatpush1.bf16.msra.mxu0 %v507
        %517 = vmatprep.subr.bf16.mxu0 0
        %518 = vmatpush1.bf16.msra.mxu0 0
        %519 = vmatprep.subr.bf16.mxu0 0
        %520 = vmatpush1.bf16.msra.mxu0 0
        %521 = vmatprep.subr.bf16.mxu0 0
        %522 = vmatpush1.bf16.msra.mxu0 0
        %523 = vmatprep.subr.bf16.mxu0 0
        %524 = vmatpush1.bf16.msra.mxu0 0
        %525 = vmatprep.subr.bf16.mxu0 0
        %526 = vmatpush1.bf16.msra.mxu0 0
        %527 = vmatprep.subr.bf16.mxu0 0
        %528 = vmatpush1.bf16.msra.mxu0 0
        %529 = vmatprep.subr.bf16.mxu0 0
        %530 = vmatpush1.bf16.msra.mxu0 0
        %531 = vmatprep.subr.bf16.mxu0 0
        %532 = vmatpush1.bf16.msra.mxu0 0
        %533 = vmatprep.subr.bf16.mxu0 0
        %534 = vmatpush1.bf16.msra.mxu0 0
        %535 = vmatprep.subr.bf16.mxu0 0
        %536 = vmatpush1.bf16.msra.mxu0 0
        %537 = vmatprep.subr.bf16.mxu0 0
        %538 = vmatpush1.bf16.msra.mxu0 0
        %539 = vmatprep.subr.bf16.mxu0 0
        %540 = vmatpush1.bf16.msra.mxu0 0
        %541 = vmatprep.subr.bf16.mxu0 0
        %542 = vmatpush1.bf16.msra.mxu0 0
        %543 = vmatprep.subr.bf16.mxu0 0
        %544 = vmatpush1.bf16.msra.mxu0 0
        %545 = vmatprep.mubr.bf16.mxu0 0
        %546 = vmatmul.mubr.bf16.gmra.mrb[0].mxu0 %v511
        %v547 = vpop.f32.mrb[0].mxu0
        %v548 = vadd.f32 0.0, %v547
        %v549 = vpop.f32.mrb[0].mxu0
        %v550 = vpop.f32.mrb[0].mxu0
        %v551 = vpop.f32.mrb[0].mxu0
        %552 = vdwg.mxu0
        %v553 = vsub.f32 0.0, %v548
        %555 = vrot.lane.b32.xlu0 %v553, 124
        %v556 = vpop.permute.xlu0 %555
        %559 = vrot.lane.b32.xlu0 %v548, 4
        %v560 = vpop.permute.xlu0 %559
        %vm562 = vcmask 31744
        %v563 = vsel %vm562, %v556, %v560
        %v564 = vmul.f32 %v548, %v473
        %v565 = vmul.f32 %v563, %v474
        %v566 = vadd.f32 %v564, %v565
        %567 = vrot.lane.b32.xlu0 %v553, 92
        %v568 = vpop.permute.xlu0 %567
        %570 = vrot.lane.b32.xlu0 %v548, 100
        %v571 = vpop.permute.xlu0 %570
        %v573 = vsel %vm562, %v568, %v571
        %575 = vrot.lane.b32.xlu0 %v473, 32
        %v576 = vpop.permute.xlu0 %575
        %v578 = vmul.f32 %v548, %v576
        %v579 = vmul.f32 %v573, %v474
        %581 = vrot.lane.b32.xlu0 %v579, 32
        %v582 = vpop.permute.xlu0 %581
        %v584 = vadd.f32 %v578, %v582
        %v585 = vpack.c.bf16 %v566, %v566
        %v586 = vpack.c.bf16 %v584, %v584
        %588 = vrot.lane.b32.xlu0 %v586, 96
        %v589 = vpop.permute.xlu0 %588
        %vm590 = vcmask 64512
        %v592 = vsel %vm590, %v585, 0
        %v595 = vsel %vm590, %v589, 0
        %597 = vmatprep.subr.bf16.mxu0 0
        %598 = vmatpush1.bf16.xpose.msra.mxu0 %v595
        %599 = vmatprep.subr.bf16.mxu0 0
        %600 = vmatpush1.bf16.xpose.msra.mxu0 0
        %601 = vmatprep.subr.bf16.mxu0 0
        %602 = vmatpush1.bf16.xpose.msra.mxu0 0
        %603 = vmatprep.subr.bf16.mxu0 0
        %604 = vmatpush1.bf16.xpose.msra.mxu0 0
        %605 = vmatprep.subr.bf16.mxu0 0
        %606 = vmatpush1.bf16.xpose.msra.mxu0 0
        %607 = vmatprep.subr.bf16.mxu0 0
        %608 = vmatpush1.bf16.xpose.msra.mxu0 0
        %609 = vmatprep.subr.bf16.mxu0 0
        %610 = vmatpush1.bf16.xpose.msra.mxu0 0
        %611 = vmatprep.subr.bf16.mxu0 0
        %612 = vmatpush1.bf16.xpose.msra.mxu0 0
        %613 = vmatprep.subr.bf16.mxu0 0
        %614 = vmatpush1.bf16.xpose.msra.mxu0 0
        %615 = vmatprep.subr.bf16.mxu0 0
        %616 = vmatpush1.bf16.xpose.msra.mxu0 0
        %617 = vmatprep.subr.bf16.mxu0 0
        %618 = vmatpush1.bf16.xpose.msra.mxu0 0
        %619 = vmatprep.subr.bf16.mxu0 0
        %620 = vmatpush1.bf16.xpose.msra.mxu0 0
        %621 = vmatprep.subr.bf16.mxu0 0
        %622 = vmatpush1.bf16.xpose.msra.mxu0 0
        %623 = vmatprep.subr.bf16.mxu0 0
        %624 = vmatpush1.bf16.xpose.msra.mxu0 0
        %625 = vmatprep.subr.bf16.mxu0 0
        %626 = vmatpush1.bf16.xpose.msra.mxu0 0
        %627 = vmatprep.subr.bf16.mxu0 0
        %628 = vmatpush1.bf16.xpose.msra.mxu0 0
        %629 = vmatprep.mubr.bf16.mxu0 0
        %630 = vmatmul.mubr.bf16.gmra.mrb[0].mxu0 %v592
        %v631 = vpop.f32.mrb[0].mxu0
        %v632 = vadd.f32 %v472, %v631
        %v633 = vpop.f32.mrb[0].mxu0
        %v634 = vpop.f32.mrb[0].mxu0
        %v635 = vpop.f32.mrb[0].mxu0
        %636 = vdwg.mxu0
        %v637 = vmax.f32 %v632, -1000000.0
        %v638 = vsel %vm590, %v637, -inf
        %639 = vmax.xlane.f32.xlu0 %v638
        %v640 = vpop.xlane.xlu0 %639
        %v641 = vsub.f32 %v637, %v640
        %v642 = vmul.f32 %v641, 1.442695
        %v643 = vpow.pop %v642
        %v644 = vsel %vm590, %v643, 0.0
        %645 = vadd.xlane.f32.xlu0 %v644
        %v646 = vpop.xlane.xlu0 %645
        %v647 = vrcp.pop %v646
        %v648 = vmul.f32 %v643, %v647
        %v649 = vpack.c.bf16 %v648, %v648
        %v650 = vpack.c.bf16 %v548, %v548
        %652 = vrot.lane.b32.xlu0 %v650, 64
        %v653 = vpop.permute.xlu0 %652
        %v655 = vsel %vm590, %v649, 0
        %vm657 = vcmask 1043456
        %v659 = vsel %vm657, %v653, 0
        %661 = vmatprep.subr.bf16.mxu0 0
        %662 = vmatpush1.bf16.msra.mxu0 %v659
        %663 = vmatprep.subr.bf16.mxu0 0
        %664 = vmatpush1.bf16.msra.mxu0 0
        %665 = vmatprep.subr.bf16.mxu0 0
        %666 = vmatpush1.bf16.msra.mxu0 0
        %667 = vmatprep.subr.bf16.mxu0 0
        %668 = vmatpush1.bf16.msra.mxu0 0
        %669 = vmatprep.subr.bf16.mxu0 0
        %670 = vmatpush1.bf16.msra.mxu0 0
        %671 = vmatprep.subr.bf16.mxu0 0
        %672 = vmatpush1.bf16.msra.mxu0 0
        %673 = vmatprep.subr.bf16.mxu0 0
        %674 = vmatpush1.bf16.msra.mxu0 0
        %675 = vmatprep.subr.bf16.mxu0 0
        %676 = vmatpush1.bf16.msra.mxu0 0
        %677 = vmatprep.subr.bf16.mxu0 0
        %678 = vmatpush1.bf16.msra.mxu0 0
        %679 = vmatprep.subr.bf16.mxu0 0
        %680 = vmatpush1.bf16.msra.mxu0 0
        %681 = vmatprep.subr.bf16.mxu0 0
        %682 = vmatpush1.bf16.msra.mxu0 0
        %683 = vmatprep.subr.bf16.mxu0 0
        %684 = vmatpush1.bf16.msra.mxu0 0
        %685 = vmatprep.subr.bf16.mxu0 0
        %686 = vmatpush1.bf16.msra.mxu0 0
        %687 = vmatprep.subr.bf16.mxu0 0
        %688 = vmatpush1.bf16.msra.mxu0 0
        %689 = vmatprep.subr.bf16.mxu0 0
        %690 = vmatpush1.bf16.msra.mxu0 0
        %691 = vmatprep.subr.bf16.mxu0 0
        %692 = vmatpush1.bf16.msra.mxu0 0
        %693 = vmatprep.mubr.bf16.mxu0 0
        %694 = vmatmul.mubr.bf16.gmra.mrb[0].mxu0 %v655
        %v695 = vpop.f32.mrb[0].mxu0
        %v696 = vadd.f32 0.0, %v695
        %v697 = vpop.f32.mrb[0].mxu0
        %v698 = vpop.f32.mrb[0].mxu0
        %v699 = vpop.f32.mrb[0].mxu0
        %700 = vdwg.mxu0
        %701 = vrot.lane.b32.xlu0 %v553, 116
        %v702 = vpop.permute.xlu0 %701
        %704 = vrot.lane.b32.xlu0 %v548, 124
        %v705 = vpop.permute.xlu0 %704
        %v707 = vsel %vm562, %v702, %v705
        %708 = vrot.lane.b32.xlu0 %v473, 8
        %v709 = vpop.permute.xlu0 %708
        %v711 = vmul.f32 %v548, %v709
        %v712 = vmul.f32 %v707, %v474
        %714 = vrot.lane.b32.xlu0 %v712, 8
        %v715 = vpop.permute.xlu0 %714
        %v717 = vadd.f32 %v711, %v715
        %718 = vrot.lane.b32.xlu0 %v553, 84
        %v719 = vpop.permute.xlu0 %718
        %721 = vrot.lane.b32.xlu0 %v548, 92
        %v722 = vpop.permute.xlu0 %721
        %v724 = vsel %vm562, %v719, %v722
        %725 = vrot.lane.b32.xlu0 %v473, 40
        %v726 = vpop.permute.xlu0 %725
        %v728 = vmul.f32 %v548, %v726
        %v729 = vmul.f32 %v724, %v474
        %731 = vrot.lane.b32.xlu0 %v729, 40
        %v732 = vpop.permute.xlu0 %731
        %v734 = vadd.f32 %v728, %v732
        %v735 = vpack.c.bf16 %v717, %v717
        %v736 = vpack.c.bf16 %v734, %v734
        %738 = vrot.lane.b32.xlu0 %v735, 120
        %v739 = vpop.permute.xlu0 %738
        %741 = vrot.lane.b32.xlu0 %v736, 88
        %v742 = vpop.permute.xlu0 %741
        %v744 = vsel %vm590, %v739, 0
        %v747 = vsel %vm590, %v742, 0
        %749 = vmatprep.subr.bf16.mxu0 0
        %750 = vmatpush1.bf16.xpose.msra.mxu0 %v747
        %751 = vmatprep.subr.bf16.mxu0 0
        %752 = vmatpush1.bf16.xpose.msra.mxu0 0
        %753 = vmatprep.subr.bf16.mxu0 0
        %754 = vmatpush1.bf16.xpose.msra.mxu0 0
        %755 = vmatprep.subr.bf16.mxu0 0
        %756 = vmatpush1.bf16.xpose.msra.mxu0 0
        %757 = vmatprep.subr.bf16.mxu0 0
        %758 = vmatpush1.bf16.xpose.msra.mxu0 0
        %759 = vmatprep.subr.bf16.mxu0 0
        %760 = vmatpush1.bf16.xpose.msra.mxu0 0
        %761 = vmatprep.subr.bf16.mxu0 0
        %762 = vmatpush1.bf16.xpose.msra.mxu0 0
        %763 = vmatprep.subr.bf16.mxu0 0
        %764 = vmatpush1.bf16.xpose.msra.mxu0 0
        %765 = vmatprep.subr.bf16.mxu0 0
        %766 = vmatpush1.bf16.xpose.msra.mxu0 0
        %767 = vmatprep.subr.bf16.mxu0 0
        %768 = vmatpush1.bf16.xpose.msra.mxu0 0
        %769 = vmatprep.subr.bf16.mxu0 0
        %770 = vmatpush1.bf16.xpose.msra.mxu0 0
        %771 = vmatprep.subr.bf16.mxu0 0
        %772 = vmatpush1.bf16.xpose.msra.mxu0 0
        %773 = vmatprep.subr.bf16.mxu0 0
        %774 = vmatpush1.bf16.xpose.msra.mxu0 0
        %775 = vmatprep.subr.bf16.mxu0 0
        %776 = vmatpush1.bf16.xpose.msra.mxu0 0
        %777 = vmatprep.subr.bf16.mxu0 0
        %778 = vmatpush1.bf16.xpose.msra.mxu0 0
        %779 = vmatprep.subr.bf16.mxu0 0
        %780 = vmatpush1.bf16.xpose.msra.mxu0 0
        %781 = vmatprep.mubr.bf16.mxu0 0
        %782 = vmatmul.mubr.bf16.gmra.mrb[0].mxu0 %v744
        %v783 = vpop.f32.mrb[0].mxu0
        %v784 = vadd.f32 %v472, %v783
        %v785 = vpop.f32.mrb[0].mxu0
        %v786 = vpop.f32.mrb[0].mxu0
        %v787 = vpop.f32.mrb[0].mxu0
        %788 = vdwg.mxu0
        %v789 = vmax.f32 %v784, -1000000.0
        %v790 = vsel %vm590, %v789, -inf
        %791 = vmax.xlane.f32.xlu0 %v790
        %v792 = vpop.xlane.xlu0 %791
        %v793 = vsub.f32 %v789, %v792
        %v794 = vmul.f32 %v793, 1.442695
        %v795 = vpow.pop %v794
        %v796 = vsel %vm590, %v795, 0.0
        %797 = vadd.xlane.f32.xlu0 %v796
        %v798 = vpop.xlane.xlu0 %797
        %v799 = vrcp.pop %v798
        %v800 = vmul.f32 %v795, %v799
        %v801 = vpack.c.bf16 %v800, %v800
        %802 = vrot.lane.b32.xlu0 %v650, 56
        %v803 = vpop.permute.xlu0 %802
        %v805 = vsel %vm590, %v801, 0
        %v808 = vsel %vm657, %v803, 0
        %810 = vmatprep.subr.bf16.mxu0 0
        %811 = vmatpush1.bf16.msra.mxu0 %v808
        %812 = vmatprep.subr.bf16.mxu0 0
        %813 = vmatpush1.bf16.msra.mxu0 0
        %814 = vmatprep.subr.bf16.mxu0 0
        %815 = vmatpush1.bf16.msra.mxu0 0
        %816 = vmatprep.subr.bf16.mxu0 0
        %817 = vmatpush1.bf16.msra.mxu0 0
        %818 = vmatprep.subr.bf16.mxu0 0
        %819 = vmatpush1.bf16.msra.mxu0 0
        %820 = vmatprep.subr.bf16.mxu0 0
        %821 = vmatpush1.bf16.msra.mxu0 0
        %822 = vmatprep.subr.bf16.mxu0 0
        %823 = vmatpush1.bf16.msra.mxu0 0
        %824 = vmatprep.subr.bf16.mxu0 0
        %825 = vmatpush1.bf16.msra.mxu0 0
        %826 = vmatprep.subr.bf16.mxu0 0
        %827 = vmatpush1.bf16.msra.mxu0 0
        %828 = vmatprep.subr.bf16.mxu0 0
        %829 = vmatpush1.bf16.msra.mxu0 0
        %830 = vmatprep.subr.bf16.mxu0 0
        %831 = vmatpush1.bf16.msra.mxu0 0
        %832 = vmatprep.subr.bf16.mxu0 0
        %833 = vmatpush1.bf16.msra.mxu0 0
        %834 = vmatprep.subr.bf16.mxu0 0
        %835 = vmatpush1.bf16.msra.mxu0 0
        %836 = vmatprep.subr.bf16.mxu0 0
        %837 = vmatpush1.bf16.msra.mxu0 0
        %838 = vmatprep.subr.bf16.mxu0 0
        %839 = vmatpush1.bf16.msra.mxu0 0
        %840 = vmatprep.subr.bf16.mxu0 0
        %841 = vmatpush1.bf16.msra.mxu0 0
        %842 = vmatprep.mubr.bf16.mxu0 0
        %843 = vmatmul.mubr.bf16.gmra.mrb[0].mxu0 %v805
        %v844 = vpop.f32.mrb[0].mxu0
        %v845 = vadd.f32 0.0, %v844
        %v846 = vpop.f32.mrb[0].mxu0
        %v847 = vpop.f32.mrb[0].mxu0
        %v848 = vpop.f32.mrb[0].mxu0
        %849 = vdwg.mxu0
        %850 = vrot.lane.b32.xlu0 %v553, 108
        %v851 = vpop.permute.xlu0 %850
        %853 = vrot.lane.b32.xlu0 %v548, 116
        %v854 = vpop.permute.xlu0 %853
        %v856 = vsel %vm562, %v851, %v854
        %857 = vrot.lane.b32.xlu0 %v473, 16
        %v858 = vpop.permute.xlu0 %857
        %v860 = vmul.f32 %v548, %v858
        %v861 = vmul.f32 %v856, %v474
        %863 = vrot.lane.b32.xlu0 %v861, 16
        %v864 = vpop.permute.xlu0 %863
        %v866 = vadd.f32 %v860, %v864
        %867 = vrot.lane.b32.xlu0 %v553, 76
        %v868 = vpop.permute.xlu0 %867
        %870 = vrot.lane.b32.xlu0 %v548, 84
        %v871 = vpop.permute.xlu0 %870
        %v873 = vsel %vm562, %v868, %v871
        %874 = vrot.lane.b32.xlu0 %v473, 48
        %v875 = vpop.permute.xlu0 %874
        %v877 = vmul.f32 %v548, %v875
        %v878 = vmul.f32 %v873, %v474
        %880 = vrot.lane.b32.xlu0 %v878, 48
        %v881 = vpop.permute.xlu0 %880
        %v883 = vadd.f32 %v877, %v881
        %v884 = vpack.c.bf16 %v866, %v866
        %v885 = vpack.c.bf16 %v883, %v883
        %887 = vrot.lane.b32.xlu0 %v884, 112
        %v888 = vpop.permute.xlu0 %887
        %890 = vrot.lane.b32.xlu0 %v885, 80
        %v891 = vpop.permute.xlu0 %890
        %v893 = vsel %vm590, %v888, 0
        %v896 = vsel %vm590, %v891, 0
        %898 = vmatprep.subr.bf16.mxu0 0
        %899 = vmatpush1.bf16.xpose.msra.mxu0 %v896
        %900 = vmatprep.subr.bf16.mxu0 0
        %901 = vmatpush1.bf16.xpose.msra.mxu0 0
        %902 = vmatprep.subr.bf16.mxu0 0
        %903 = vmatpush1.bf16.xpose.msra.mxu0 0
        %904 = vmatprep.subr.bf16.mxu0 0
        %905 = vmatpush1.bf16.xpose.msra.mxu0 0
        %906 = vmatprep.subr.bf16.mxu0 0
        %907 = vmatpush1.bf16.xpose.msra.mxu0 0
        %908 = vmatprep.subr.bf16.mxu0 0
        %909 = vmatpush1.bf16.xpose.msra.mxu0 0
        %910 = vmatprep.subr.bf16.mxu0 0
        %911 = vmatpush1.bf16.xpose.msra.mxu0 0
        %912 = vmatprep.subr.bf16.mxu0 0
        %913 = vmatpush1.bf16.xpose.msra.mxu0 0
        %914 = vmatprep.subr.bf16.mxu0 0
        %915 = vmatpush1.bf16.xpose.msra.mxu0 0
        %916 = vmatprep.subr.bf16.mxu0 0
        %917 = vmatpush1.bf16.xpose.msra.mxu0 0
        %918 = vmatprep.subr.bf16.mxu0 0
        %919 = vmatpush1.bf16.xpose.msra.mxu0 0
        %920 = vmatprep.subr.bf16.mxu0 0
        %921 = vmatpush1.bf16.xpose.msra.mxu0 0
        %922 = vmatprep.subr.bf16.mxu0 0
        %923 = vmatpush1.bf16.xpose.msra.mxu0 0
        %924 = vmatprep.subr.bf16.mxu0 0
        %925 = vmatpush1.bf16.xpose.msra.mxu0 0
        %926 = vmatprep.subr.bf16.mxu0 0
        %927 = vmatpush1.bf16.xpose.msra.mxu0 0
        %928 = vmatprep.subr.bf16.mxu0 0
        %929 = vmatpush1.bf16.xpose.msra.mxu0 0
        %930 = vmatprep.mubr.bf16.mxu0 0
        %931 = vmatmul.mubr.bf16.gmra.mrb[0].mxu0 %v893
        %v932 = vpop.f32.mrb[0].mxu0
        %v933 = vadd.f32 %v472, %v932
        %v934 = vpop.f32.mrb[0].mxu0
        %v935 = vpop.f32.mrb[0].mxu0
        %v936 = vpop.f32.mrb[0].mxu0
        %937 = vdwg.mxu0
        %v938 = vmax.f32 %v933, -1000000.0
        %v939 = vsel %vm590, %v938, -inf
        %940 = vmax.xlane.f32.xlu0 %v939
        %v941 = vpop.xlane.xlu0 %940
        %v942 = vsub.f32 %v938, %v941
        %v943 = vmul.f32 %v942, 1.442695
        %v944 = vpow.pop %v943
        %v945 = vsel %vm590, %v944, 0.0
        %946 = vadd.xlane.f32.xlu0 %v945
        %v947 = vpop.xlane.xlu0 %946
        %v948 = vrcp.pop %v947
        %v949 = vmul.f32 %v944, %v948
        %v950 = vpack.c.bf16 %v949, %v949
        %951 = vrot.lane.b32.xlu0 %v650, 48
        %v952 = vpop.permute.xlu0 %951
        %v954 = vsel %vm590, %v950, 0
        %v957 = vsel %vm657, %v952, 0
        %959 = vmatprep.subr.bf16.mxu0 0
        %960 = vmatpush1.bf16.msra.mxu0 %v957
        %961 = vmatprep.subr.bf16.mxu0 0
        %962 = vmatpush1.bf16.msra.mxu0 0
        %963 = vmatprep.subr.bf16.mxu0 0
        %964 = vmatpush1.bf16.msra.mxu0 0
        %965 = vmatprep.subr.bf16.mxu0 0
        %966 = vmatpush1.bf16.msra.mxu0 0
        %967 = vmatprep.subr.bf16.mxu0 0
        %968 = vmatpush1.bf16.msra.mxu0 0
        %969 = vmatprep.subr.bf16.mxu0 0
        %970 = vmatpush1.bf16.msra.mxu0 0
        %971 = vmatprep.subr.bf16.mxu0 0
        %972 = vmatpush1.bf16.msra.mxu0 0
        %973 = vmatprep.subr.bf16.mxu0 0
        %974 = vmatpush1.bf16.msra.mxu0 0
        %975 = vmatprep.subr.bf16.mxu0 0
        %976 = vmatpush1.bf16.msra.mxu0 0
        %977 = vmatprep.subr.bf16.mxu0 0
        %978 = vmatpush1.bf16.msra.mxu0 0
        %979 = vmatprep.subr.bf16.mxu0 0
        %980 = vmatpush1.bf16.msra.mxu0 0
        %981 = vmatprep.subr.bf16.mxu0 0
        %982 = vmatpush1.bf16.msra.mxu0 0
        %983 = vmatprep.subr.bf16.mxu0 0
        %984 = vmatpush1.bf16.msra.mxu0 0
        %985 = vmatprep.subr.bf16.mxu0 0
        %986 = vmatpush1.bf16.msra.mxu0 0
        %987 = vmatprep.subr.bf16.mxu0 0
        %988 = vmatpush1.bf16.msra.mxu0 0
        %989 = vmatprep.subr.bf16.mxu0 0
        %990 = vmatpush1.bf16.msra.mxu0 0
        %991 = vmatprep.mubr.bf16.mxu0 0
        %992 = vmatmul.mubr.bf16.gmra.mrb[0].mxu0 %v954
        %v993 = vpop.f32.mrb[0].mxu0
        %v994 = vadd.f32 0.0, %v993
        %v995 = vpop.f32.mrb[0].mxu0
        %v996 = vpop.f32.mrb[0].mxu0
        %v997 = vpop.f32.mrb[0].mxu0
        %998 = vdwg.mxu0
        %999 = vrot.lane.b32.xlu0 %v553, 100
        %v1000 = vpop.permute.xlu0 %999
        %1002 = vrot.lane.b32.xlu0 %v548, 108
        %v1003 = vpop.permute.xlu0 %1002
        %v1005 = vsel %vm562, %v1000, %v1003
        %1006 = vrot.lane.b32.xlu0 %v473, 24
        %v1007 = vpop.permute.xlu0 %1006
        %v1009 = vmul.f32 %v548, %v1007
        %v1010 = vmul.f32 %v1005, %v474
        %1012 = vrot.lane.b32.xlu0 %v1010, 24
        %v1013 = vpop.permute.xlu0 %1012
        %v1015 = vadd.f32 %v1009, %v1013
        %1016 = vrot.lane.b32.xlu0 %v553, 68
        %v1017 = vpop.permute.xlu0 %1016
        %1019 = vrot.lane.b32.xlu0 %v548, 76
        %v1020 = vpop.permute.xlu0 %1019
        %v1022 = vsel %vm562, %v1017, %v1020
        %1023 = vrot.lane.b32.xlu0 %v473, 56
        %v1024 = vpop.permute.xlu0 %1023
        %v1026 = vmul.f32 %v548, %v1024
        %v1027 = vmul.f32 %v1022, %v474
        %1029 = vrot.lane.b32.xlu0 %v1027, 56
        %v1030 = vpop.permute.xlu0 %1029
        %v1032 = vadd.f32 %v1026, %v1030
        %v1033 = vpack.c.bf16 %v1015, %v1015
        %v1034 = vpack.c.bf16 %v1032, %v1032
        %1036 = vrot.lane.b32.xlu0 %v1033, 104
        %v1037 = vpop.permute.xlu0 %1036
        %1039 = vrot.lane.b32.xlu0 %v1034, 72
        %v1040 = vpop.permute.xlu0 %1039
        %v1042 = vsel %vm590, %v1037, 0
        %v1045 = vsel %vm590, %v1040, 0
        %1047 = vmatprep.subr.bf16.mxu0 0
        %1048 = vmatpush1.bf16.xpose.msra.mxu0 %v1045
        %1049 = vmatprep.subr.bf16.mxu0 0
        %1050 = vmatpush1.bf16.xpose.msra.mxu0 0
        %1051 = vmatprep.subr.bf16.mxu0 0
        %1052 = vmatpush1.bf16.xpose.msra.mxu0 0
        %1053 = vmatprep.subr.bf16.mxu0 0
        %1054 = vmatpush1.bf16.xpose.msra.mxu0 0
        %1055 = vmatprep.subr.bf16.mxu0 0
        %1056 = vmatpush1.bf16.xpose.msra.mxu0 0
        %1057 = vmatprep.subr.bf16.mxu0 0
        %1058 = vmatpush1.bf16.xpose.msra.mxu0 0
        %1059 = vmatprep.subr.bf16.mxu0 0
        %1060 = vmatpush1.bf16.xpose.msra.mxu0 0
        %1061 = vmatprep.subr.bf16.mxu0 0
        %1062 = vmatpush1.bf16.xpose.msra.mxu0 0
        %1063 = vmatprep.subr.bf16.mxu0 0
        %1064 = vmatpush1.bf16.xpose.msra.mxu0 0
        %1065 = vmatprep.subr.bf16.mxu0 0
        %1066 = vmatpush1.bf16.xpose.msra.mxu0 0
        %1067 = vmatprep.subr.bf16.mxu0 0
        %1068 = vmatpush1.bf16.xpose.msra.mxu0 0
        %1069 = vmatprep.subr.bf16.mxu0 0
        %1070 = vmatpush1.bf16.xpose.msra.mxu0 0
        %1071 = vmatprep.subr.bf16.mxu0 0
        %1072 = vmatpush1.bf16.xpose.msra.mxu0 0
        %1073 = vmatprep.subr.bf16.mxu0 0
        %1074 = vmatpush1.bf16.xpose.msra.mxu0 0
        %1075 = vmatprep.subr.bf16.mxu0 0
        %1076 = vmatpush1.bf16.xpose.msra.mxu0 0
        %1077 = vmatprep.subr.bf16.mxu0 0
        %1078 = vmatpush1.bf16.xpose.msra.mxu0 0
        %1079 = vmatprep.mubr.bf16.mxu0 0
        %1080 = vmatmul.mubr.bf16.gmra.mrb[0].mxu0 %v1042
        %v1081 = vpop.f32.mrb[0].mxu0
        %v1082 = vadd.f32 %v472, %v1081
        %v1083 = vpop.f32.mrb[0].mxu0
        %v1084 = vpop.f32.mrb[0].mxu0
        %v1085 = vpop.f32.mrb[0].mxu0
        %1086 = vdwg.mxu0
        %v1087 = vmax.f32 %v1082, -1000000.0
        %v1088 = vsel %vm590, %v1087, -inf
        %1089 = vmax.xlane.f32.xlu0 %v1088
        %v1090 = vpop.xlane.xlu0 %1089
        %v1091 = vsub.f32 %v1087, %v1090
        %v1092 = vmul.f32 %v1091, 1.442695
        %v1093 = vpow.pop %v1092
        %v1094 = vsel %vm590, %v1093, 0.0
        %1095 = vadd.xlane.f32.xlu0 %v1094
        %v1096 = vpop.xlane.xlu0 %1095
        %v1097 = vrcp.pop %v1096
        %v1098 = vmul.f32 %v1093, %v1097
        %v1099 = vpack.c.bf16 %v1098, %v1098
        %1100 = vrot.lane.b32.xlu0 %v650, 40
        %v1101 = vpop.permute.xlu0 %1100
        %v1103 = vsel %vm590, %v1099, 0
        %v1106 = vsel %vm657, %v1101, 0
        %1108 = vmatprep.subr.bf16.mxu0 0
        %1109 = vmatpush1.bf16.msra.mxu0 %v1106
        %1110 = vmatprep.subr.bf16.mxu0 0
        %1111 = vmatpush1.bf16.msra.mxu0 0
        %1112 = vmatprep.subr.bf16.mxu0 0
        %1113 = vmatpush1.bf16.msra.mxu0 0
        %1114 = vmatprep.subr.bf16.mxu0 0
        %1115 = vmatpush1.bf16.msra.mxu0 0
        %1116 = vmatprep.subr.bf16.mxu0 0
        %1117 = vmatpush1.bf16.msra.mxu0 0
        %1118 = vmatprep.subr.bf16.mxu0 0
        %1119 = vmatpush1.bf16.msra.mxu0 0
        %1120 = vmatprep.subr.bf16.mxu0 0
        %1121 = vmatpush1.bf16.msra.mxu0 0
        %1122 = vmatprep.subr.bf16.mxu0 0
        %1123 = vmatpush1.bf16.msra.mxu0 0
        %1124 = vmatprep.subr.bf16.mxu0 0
        %1125 = vmatpush1.bf16.msra.mxu0 0
        %1126 = vmatprep.subr.bf16.mxu0 0
        %1127 = vmatpush1.bf16.msra.mxu0 0
        %1128 = vmatprep.subr.bf16.mxu0 0
        %1129 = vmatpush1.bf16.msra.mxu0 0
        %1130 = vmatprep.subr.bf16.mxu0 0
        %1131 = vmatpush1.bf16.msra.mxu0 0
        %1132 = vmatprep.subr.bf16.mxu0 0
        %1133 = vmatpush1.bf16.msra.mxu0 0
        %1134 = vmatprep.subr.bf16.mxu0 0
        %1135 = vmatpush1.bf16.msra.mxu0 0
        %1136 = vmatprep.subr.bf16.mxu0 0
        %1137 = vmatpush1.bf16.msra.mxu0 0
        %1138 = vmatprep.subr.bf16.mxu0 0
        %1139 = vmatpush1.bf16.msra.mxu0 0
        %1140 = vmatprep.mubr.bf16.mxu0 0
        %1141 = vmatmul.mubr.bf16.gmra.mrb[0].mxu0 %v1103
        %v1142 = vpop.f32.mrb[0].mxu0
        %v1143 = vadd.f32 0.0, %v1142
        %v1144 = vpop.f32.mrb[0].mxu0
        %v1145 = vpop.f32.mrb[0].mxu0
        %v1146 = vpop.f32.mrb[0].mxu0
        %1147 = vdwg.mxu0
        %1149 = vrot.lane.b32.xlu0 %v845, 8
        %v1150 = vpop.permute.xlu0 %1149
        %1153 = vrot.lane.b32.xlu0 %v994, 16
        %v1154 = vpop.permute.xlu0 %1153
        %1157 = vrot.lane.b32.xlu0 %v1143, 24
        %v1158 = vpop.permute.xlu0 %1157
        %v1160 = vsel %vm590, %v696, %v1150
        %vm1161 = vcmask 130048
        %v1162 = vsel %vm1161, %v1160, %v1154
        %vm1163 = vcmask 195584
        %v1164 = vsel %vm1163, %v1162, %v1158
        %v1165 = vpack.c.bf16 %v1164, %v1164
        %v1166 = vld [vmem:[#allocation7] sm:$0xf]
        %v1167 = vld [vmem:[#allocation7 + $0x4] sm:$0xf]
        %v1168 = vld [vmem:[#allocation7 + $0x8] sm:$0xf]
        %v1169 = vld [vmem:[#allocation7 + $0xc] sm:$0xf]
        %v1174 = vunpack.c.l.b16 %v1166
        %v1175 = vunpack.c.l.b16 %v1167
        %v1176 = vunpack.c.l.b16 %v1168
        %v1177 = vunpack.c.l.b16 %v1169
        %v1178 = vpack.c.b16 %v1175, %v1174
        %v1179 = vpack.c.b16 %v1177, %v1176
        %v1183 = vsel %vm476, %v1165, 0
        %1185 = vmatprep.subr.bf16.mxu0 0
        %1186 = vmatpush1.bf16.msra.mxu0 %v1178
        %1187 = vmatprep.subr.bf16.mxu0 0
        %1188 = vmatpush1.bf16.msra.mxu0 %v1179
        %1189 = vmatprep.subr.bf16.mxu0 0
        %1190 = vmatpush1.bf16.msra.mxu0 0
        %1191 = vmatprep.subr.bf16.mxu0 0
        %1192 = vmatpush1.bf16.msra.mxu0 0
        %1193 = vmatprep.subr.bf16.mxu0 0
        %1194 = vmatpush1.bf16.msra.mxu0 0
        %1195 = vmatprep.subr.bf16.mxu0 0
        %1196 = vmatpush1.bf16.msra.mxu0 0
        %1197 = vmatprep.subr.bf16.mxu0 0
        %1198 = vmatpush1.bf16.msra.mxu0 0
        %1199 = vmatprep.subr.bf16.mxu0 0
        %1200 = vmatpush1.bf16.msra.mxu0 0
        %1201 = vmatprep.subr.bf16.mxu0 0
        %1202 = vmatpush1.bf16.msra.mxu0 0
        %1203 = vmatprep.subr.bf16.mxu0 0
        %1204 = vmatpush1.bf16.msra.mxu0 0
        %1205 = vmatprep.subr.bf16.mxu0 0
        %1206 = vmatpush1.bf16.msra.mxu0 0
        %1207 = vmatprep.subr.bf16.mxu0 0
        %1208 = vmatpush1.bf16.msra.mxu0 0
        %1209 = vmatprep.subr.bf16.mxu0 0
        %1210 = vmatpush1.bf16.msra.mxu0 0
        %1211 = vmatprep.subr.bf16.mxu0 0
        %1212 = vmatpush1.bf16.msra.mxu0 0
        %1213 = vmatprep.subr.bf16.mxu0 0
        %1214 = vmatpush1.bf16.msra.mxu0 0
        %1215 = vmatprep.subr.bf16.mxu0 0
        %1216 = vmatpush1.bf16.msra.mxu0 0
        %1217 = vmatprep.mubr.bf16.mxu0 0
        %1218 = vmatmul.mubr.bf16.gmra.mrb[0].mxu0 %v1183
        %v1219 = vpop.f32.mrb[0].mxu0
        %v1220 = vadd.f32 0.0, %v1219
        %v1221 = vpop.f32.mrb[0].mxu0
        %v1222 = vpop.f32.mrb[0].mxu0
        %v1223 = vpop.f32.mrb[0].mxu0
        %1224 = vdwg.mxu0
        %v1225 = vadd.f32 %v471, %v1220
        %v1226 = vmul.f32 %v1225, %v1225
        %v1227 = vsel %vm476, %v1226, 0.0
        %1228 = vadd.xlane.f32.xlu0 %v1227
        %v1229 = vpop.xlane.xlu0 %1228
        %v1230 = vmul.f32 %v1229, %v480
        %v1231 = vadd.f32 %v1230, 1e-06
        %v1232 = vrsqrt.pop %v1231
        %v1233 = vmul.f32 %v1225, %v1232
        %v1234 = vld [vmem:[%s5] sm:$0x1]
        %v1236 = vlaneseq
        %v1237 = vshrl.u32 %v1236, 7
        %v1238 = vsub.s32 0, %v1237
        %v1239 = vrot.slane %v1234, %v1238
        %v1241 = vmul.f32 %v1233, %v1239
        %v1242 = vpack.c.bf16 %v1241, %v1241
        %v1243 = vld [vmem:[#allocation8] sm:$0xf]
        %v1244 = vld [vmem:[#allocation8 + $0x4] sm:$0xf]
        %v1245 = vld [vmem:[#allocation8 + $0x8] sm:$0xf]
        %v1246 = vld [vmem:[#allocation8 + $0xc] sm:$0xf]
        %v1251 = vunpack.c.l.b16 %v1243
        %v1252 = vunpack.c.l.b16 %v1244
        %v1253 = vunpack.c.l.b16 %v1245
        %v1254 = vunpack.c.l.b16 %v1246
        %v1255 = vpack.c.b16 %v1252, %v1251
        %v1256 = vpack.c.b16 %v1254, %v1253
        %v1260 = vsel %vm476, %v1242, 0
        %1262 = vmatprep.subr.bf16.mxu0 0
        %1263 = vmatpush1.bf16.msra.mxu0 %v1255
        %1264 = vmatprep.subr.bf16.mxu0 0
        %1265 = vmatpush1.bf16.msra.mxu0 %v1256
        %1266 = vmatprep.subr.bf16.mxu0 0
        %1267 = vmatpush1.bf16.msra.mxu0 0
        %1268 = vmatprep.subr.bf16.mxu0 0
        %1269 = vmatpush1.bf16.msra.mxu0 0
        %1270 = vmatprep.subr.bf16.mxu0 0
        %1271 = vmatpush1.bf16.msra.mxu0 0
        %1272 = vmatprep.subr.bf16.mxu0 0
        %1273 = vmatpush1.bf16.msra.mxu0 0
        %1274 = vmatprep.subr.bf16.mxu0 0
        %1275 = vmatpush1.bf16.msra.mxu0 0
        %1276 = vmatprep.subr.bf16.mxu0 0
        %1277 = vmatpush1.bf16.msra.mxu0 0
        %1278 = vmatprep.subr.bf16.mxu0 0
        %1279 = vmatpush1.bf16.msra.mxu0 0
        %1280 = vmatprep.subr.bf16.mxu0 0
        %1281 = vmatpush1.bf16.msra.mxu0 0
        %1282 = vmatprep.subr.bf16.mxu0 0
        %1283 = vmatpush1.bf16.msra.mxu0 0
        %1284 = vmatprep.subr.bf16.mxu0 0
        %1285 = vmatpush1.bf16.msra.mxu0 0
        %1286 = vmatprep.subr.bf16.mxu0 0
        %1287 = vmatpush1.bf16.msra.mxu0 0
        %1288 = vmatprep.subr.bf16.mxu0 0
        %1289 = vmatpush1.bf16.msra.mxu0 0
        %1290 = vmatprep.subr.bf16.mxu0 0
        %1291 = vmatpush1.bf16.msra.mxu0 0
        %1292 = vmatprep.subr.bf16.mxu0 0
        %1293 = vmatpush1.bf16.msra.mxu0 0
        %1294 = vmatprep.mubr.bf16.mxu0 0
        %1295 = vmatmul.mubr.bf16.gmra.mrb[0].mxu0 %v1260
        %v1296 = vpop.f32.mrb[0].mxu0
        %v1297 = vadd.f32 0.0, %v1296
        %v1298 = vpop.f32.mrb[0].mxu0
        %v1299 = vpop.f32.mrb[0].mxu0
        %v1300 = vpop.f32.mrb[0].mxu0
        %1301 = vdwg.mxu0
        %v1302 = vxor.u32 %v1297, 2147483648
        %v1303 = vmul.f32 %v1302, 1.442695
        %v1304 = vpow.pop %v1303
        %v1305 = vadd.f32 %v1304, 1.0
        %v1306 = vrcp.pop %v1305
        %v1307 = vmul.f32 1.0, %v1306
        %v1308 = vmul.f32 %v1297, %v1307
        %1310 = vrot.lane.b32.xlu0 %v1297, 64
        %v1311 = vpop.permute.xlu0 %1310
        %v1313 = vmul.f32 %v1308, %v1311
        %v1314 = vpack.c.bf16 %v1313, %v1313
        %v1315 = vld [vmem:[%s9] sm:$0xf]
        %v1316 = vld [vmem:[%s9 + $0x4] sm:$0xf]
        %v1317 = vld [vmem:[%s9 + $0x8] sm:$0xf]
        %v1318 = vld [vmem:[%s9 + $0xc] sm:$0xf]
        %v1319 = vld [vmem:[%s9 + $0x10] sm:$0xf]
        %v1320 = vld [vmem:[%s9 + $0x14] sm:$0xf]
        %v1321 = vld [vmem:[%s9 + $0x18] sm:$0xf]
        %v1322 = vld [vmem:[%s9 + $0x1c] sm:$0xf]
        %v1331 = vunpack.c.l.b16 %v1315
        %v1332 = vunpack.c.l.b16 %v1316
        %v1333 = vunpack.c.l.b16 %v1317
        %v1334 = vunpack.c.l.b16 %v1318
        %v1335 = vunpack.c.l.b16 %v1319
        %v1336 = vunpack.c.l.b16 %v1320
        %v1337 = vunpack.c.l.b16 %v1321
        %v1338 = vunpack.c.l.b16 %v1322
        %v1339 = vpack.c.b16 %v1332, %v1331
        %v1340 = vpack.c.b16 %v1334, %v1333
        %v1341 = vpack.c.b16 %v1336, %v1335
        %v1342 = vpack.c.b16 %v1338, %v1337
        %vm1347 = vcmask 523264
        %v1349 = vsel %vm1347, %v1314, 0
        %1351 = vmatprep.subr.bf16.mxu0 0
        %1352 = vmatpush1.bf16.msra.mxu0 %v1339
        %1353 = vmatprep.subr.bf16.mxu0 0
        %1354 = vmatpush1.bf16.msra.mxu0 %v1340
        %1355 = vmatprep.subr.bf16.mxu0 0
        %1356 = vmatpush1.bf16.msra.mxu0 %v1341
        %1357 = vmatprep.subr.bf16.mxu0 0
        %1358 = vmatpush1.bf16.msra.mxu0 %v1342
        %1359 = vmatprep.subr.bf16.mxu0 0
        %1360 = vmatpush1.bf16.msra.mxu0 0
        %1361 = vmatprep.subr.bf16.mxu0 0
        %1362 = vmatpush1.bf16.msra.mxu0 0
        %1363 = vmatprep.subr.bf16.mxu0 0
        %1364 = vmatpush1.bf16.msra.mxu0 0
        %1365 = vmatprep.subr.bf16.mxu0 0
        %1366 = vmatpush1.bf16.msra.mxu0 0
        %1367 = vmatprep.subr.bf16.mxu0 0
        %1368 = vmatpush1.bf16.msra.mxu0 0
        %1369 = vmatprep.subr.bf16.mxu0 0
        %1370 = vmatpush1.bf16.msra.mxu0 0
        %1371 = vmatprep.subr.bf16.mxu0 0
        %1372 = vmatpush1.bf16.msra.mxu0 0
        %1373 = vmatprep.subr.bf16.mxu0 0
        %1374 = vmatpush1.bf16.msra.mxu0 0
        %1375 = vmatprep.subr.bf16.mxu0 0
        %1376 = vmatpush1.bf16.msra.mxu0 0
        %1377 = vmatprep.subr.bf16.mxu0 0
        %1378 = vmatpush1.bf16.msra.mxu0 0
        %1379 = vmatprep.subr.bf16.mxu0 0
        %1380 = vmatpush1.bf16.msra.mxu0 0
        %1381 = vmatprep.subr.bf16.mxu0 0
        %1382 = vmatpush1.bf16.msra.mxu0 0
        %1383 = vmatprep.mubr.bf16.mxu0 0
        %1384 = vmatmul.mubr.bf16.gmra.mrb[0].mxu0 %v1349
        %v1385 = vpop.f32.mrb[0].mxu0
        %v1386 = vadd.f32 0.0, %v1385
        %v1387 = vpop.f32.mrb[0].mxu0
        %v1388 = vpop.f32.mrb[0].mxu0
        %v1389 = vpop.f32.mrb[0].mxu0
        %1390 = vdwg.mxu0
        %v1391 = vadd.f32 %v1225, %v1386
        %1392 = vst.msk [vmem:[%s457] sm:$0xff] %vm476, %v1391
        %s1393 = sand.u32 %s267, 1
        %s1394 = scalar_lea.sflag [#allocation4], %s1393
        %s1395 = sand.u32 %s267, 1
        %s1396 = smul.addr %s1395, 8
        %s1397 = scalar_lea.vmem [#allocation10], %s1396
        // Predicated region
        $region77: #{tpu_custom_call.1} parent=59 // pred_check
          %p1398 = pneg %p277
        $region78: #{tpu_custom_call.1} parent=59 // pred_check_branch
          %1400 = sbr.rel (%p1398) target = $region80
        $region79: #{tpu_custom_call.1} parent=59 // pred_region
          %s1402 = ssub.s32 128, 128
          %1403 = vsyncadd %s1394, %s1402
          %s1404 = smul.addr %s29, 128
          %s1405 = scalar_lea.hbm %s10, %s1404
          %s1407 = sshll.u32 %s1397, 4
          %s1408 = int_to_ptr.vmem [resolvable:$true] %s1407
          %1410 = dma.vmem_to_hbm [thread:$0]  %s1408, 128, %s1405, %s1394
        $region80: #{tpu_custom_call.1} parent=59 // pred_fallthru
          _
      $region60: #{tpu_custom_call.1} parent=5 // pred_fallthru
        _
      %p1411 = scmp.le.s32.totalorder 2, %s24
      // Predicated region
      $region81: #{tpu_custom_call.1} parent=5 // pred_check
        %p1412 = pneg %p1411
      $region82: #{tpu_custom_call.1} parent=5 // pred_check_branch
        %1414 = sbr.rel (%p1412) target = $region84
      $region83: #{tpu_custom_call.1} parent=5 // pred_region
        %s1415 = ssub.s32 %s24, 2
        // Predicated region
        $region85: #{tpu_custom_call.1} parent=83 // pred_check
          %p1416 = pneg %p283
        $region86: #{tpu_custom_call.1} parent=83 // pred_check_branch
          %1418 = sbr.rel (%p1416) target = $region88
        $region87: #{tpu_custom_call.1} parent=83 // pred_region
          %s1419 = sand.u32 %s268, 1
          %s1420 = scalar_lea.sflag [#allocation4], %s1419
          %s1421 = sand.u32 %s268, 1
          %s1422 = smul.addr %s1421, 8
          %s1423 = scalar_lea.vmem [#allocation10], %s1422
          %1424 = dma.done %s1420, 128
        $region88: #{tpu_custom_call.1} parent=83 // pred_fallthru
          _
      $region84: #{tpu_custom_call.1} parent=5 // pred_fallthru
        _
    $region6: #{tpu_custom_call.1} parent=1 // loop_footer
      %s28 = sadd.s32 1, %s24
    $region7: #{tpu_custom_call.1} parent=1 // loop_footer_branch
      %23 = sbr.rel target = $region3
    $region8: #{tpu_custom_call.1} parent=1 // loop_exit
      _
    %1425 = vsyncpa [#allocation3], 1
    %s1426 = scalar_lea.sflag [#allocation3], 1
    %1427 = vsyncpa %s1426, 1
    %1428 = vsyncpa [#allocation6], 1
    %1429 = vsyncpa [#allocation9], 1
    %1430 = vsyncpa [#allocation4], 1
    %s1431 = scalar_lea.sflag [#allocation4], 1
    %1432 = vsyncpa %s1431, 1

</llo_original>
